<compile_context>
chip_gen: v7x
topology: tpu7x:2x2x1
jax: 0.10.0
libtpu: 0.0.40
codegen_flags: <defaults>
</compile_context>

<pallas_src>
import functools

import jax
import jax.numpy as jnp
from jax import lax
from jax.experimental import pallas as pl
from jax.experimental.pallas import tpu as pltpu


# -----------------------------------------------------------------------------
# Wrapper-side effective-weight construction (runs once).
# With k=8, s=4, p=2 the hi-res tensor in phase form h[q, r, c]
# (full-res pixel = 4*q + r, r in [0,4)) makes both the transposed and the
# strided conv exact 3x3 convolutions over the low-res grid q.  Tap index
# t in {0,1,2} corresponds to low-res neighbour q + (t - 1).
# -----------------------------------------------------------------------------
def _deconv_tap_index(t, r):
    if t == 0:
        return r + 6 if r < 2 else None
    if t == 1:
        return r + 2
    return r - 2 if r >= 2 else None


def _conv_tap_index(t, r):
    if t == 0:
        return r - 2 if r >= 2 else None
    if t == 1:
        return r + 2
    return r + 6 if r < 2 else None


def _deconv_eff_weight(w):
    """w: (Cin, Cout, 8, 8) ConvTranspose2d weight -> (9*Cin, 16*Cout) (K-major taps)."""
    cin, cout = w.shape[0], w.shape[1]
    zero = jnp.zeros((cin, cout), w.dtype)
    taps = []
    for th in range(3):
        for tw in range(3):
            cols = []
            for rh in range(4):
                kh = _deconv_tap_index(th, rh)
                for rw in range(4):
                    kw = _deconv_tap_index(tw, rw)
                    cols.append(zero if (kh is None or kw is None)
                                else w[:, :, kh, kw])             # (Cin, Cout)
            taps.append(jnp.concatenate(cols, axis=1))            # (Cin, 16*Cout)
    return jnp.concatenate(taps, axis=0)                          # (9*Cin, 16*Cout)


def _conv_eff_weight(w):
    """w: (Cout, Cin, 8, 8) Conv2d weight -> (16*Cin, 9*Cout) (taps along N)."""
    cout, cin = w.shape[0], w.shape[1]
    zero = jnp.zeros((cin, cout), w.dtype)
    taps = []
    for th in range(3):
        for tw in range(3):
            rows = []
            for rh in range(4):
                kh = _conv_tap_index(th, rh)
                for rw in range(4):
                    kw = _conv_tap_index(tw, rw)
                    rows.append(zero if (kh is None or kw is None)
                                else jnp.transpose(w[:, :, kh, kw]))  # (Cin, Cout)
            taps.append(jnp.concatenate(rows, axis=0))            # (16*Cin, Cout)
    return jnp.concatenate(taps, axis=1)                          # (16*Cin, 9*Cout)


# -----------------------------------------------------------------------------
# Fused UpBlock kernel.  One grid step = (image b, row-tile t): TH low-res rows
# of phase-decomposed hi-res output; h0 / l0 / h1 never touch HBM.
# -----------------------------------------------------------------------------
def _upblock_kernel(x_ref, w1_ref, w2_ref, w3_ref, p1_ref, p2_ref, p3_ref,
                    o_ref, hp_ref, dp_ref, *, TH, W, WPAD, C):
    F = 16 * C
    f32 = jnp.float32
    bf16 = jnp.bfloat16
    tile = pl.program_id(1)
    last = pl.num_programs(1) - 1
    t0 = pl.multiple_of(tile * TH, TH)

    # Bias / PReLU-slope rows, loaded once (hoisted out of the per-stage calls).
    b1, a1 = p1_ref[0:1, :].reshape(1, 1, F), p1_ref[1:2, :].reshape(1, 1, F)
    b2, a2 = p2_ref[0:1, :].reshape(1, 1, C), p2_ref[1:2, :].reshape(1, 1, C)
    b3, a3 = p3_ref[0:1, :].reshape(1, 1, F), p3_ref[1:2, :].reshape(1, 1, F)

    def bias_prelu(y, b, a):
        y = y + b
        return jnp.where(y >= 0.0, y, y * a)

    def deconv3x3(src, w_ref, rows):
        # One big-K MXU matmul: im2col patch (rows*W, 9C) @ (9C, 16C), f32 acc.
        taps = [src[i:i + rows, j:j + W, :]
                for i in range(3) for j in range(3)]
        patch = jnp.concatenate(taps, axis=-1).reshape(rows * W, 9 * C)
        out = jnp.dot(patch, w_ref[...], preferred_element_type=f32)
        return out.reshape(rows, W, F)

    # ---- up_conv1: h0 on TH+4 halo rows (low-res rows [t0-2, t0+TH+2)) ------
    xq = x_ref[0, pl.ds(t0, TH + 6), :, :]                  # (TH+6, WPAD, C) bf16
    h0 = bias_prelu(deconv3x3(xq, w1_ref, TH + 4), b1, a1)  # (TH+4, W, F) f32

    # Park the central TH rows (the residual-add term) in the output block
    # (f32, no extra VMEM) and the full halo range (bf16) in the h0 scratch,
    # so the f32 SSA value dies before the next two convs.
    o_ref[0] = h0[2:TH + 2, :, :].astype(o_ref.dtype)
    hp_ref[:, 1:W + 1, :] = h0.astype(bf16)

    # Zero only the border strips (never the full buffer).
    hp_ref[:, 0:1, :] = jnp.zeros((TH + 4, 1, F), bf16)
    hp_ref[:, W + 1:WPAD, :] = jnp.zeros((TH + 4, WPAD - W - 1, F), bf16)

    @pl.when(tile == 0)
    def _():  # rows above the image must be exact zeros for conv2's padding
        hp_ref[0:2, :, :] = jnp.zeros((2, WPAD, F), bf16)

    @pl.when(tile == last)
    def _():  # rows below the image
        hp_ref[TH + 2:TH + 4, :, :] = jnp.zeros((2, WPAD, F), bf16)

    # ---- up_conv2: l0 on TH+2 halo rows (low-res rows [t0-1, t0+TH+1)) ------
    # All 9 taps batched along the matmul N dimension (full MXU output width);
    # the recombination is 9 shifted, C-wide adds on the VPU.
    part = jnp.dot(hp_ref[...].reshape((TH + 4) * WPAD, F), w2_ref[...],
                   preferred_element_type=f32).reshape(TH + 4, WPAD, 9 * C)
    slabs = [part[i:i + TH + 2, j:j + W, (3 * i + j) * C:(3 * i + j + 1) * C]
             for i in range(3) for j in range(3)]
    l0 = bias_prelu(functools.reduce(lambda u, v: u + v, slabs), b2, a2)

    # ---- residual d = l0 - x on the same TH+2 rows ---------------------------
    d = l0 - xq[2:TH + 4, 1:W + 1, :].astype(f32)
    dp_ref[:, 1:W + 1, :] = d.astype(bf16)
    dp_ref[:, 0:1, :] = jnp.zeros((TH + 2, 1, C), bf16)
    dp_ref[:, W + 1:WPAD, :] = jnp.zeros((TH + 2, WPAD - W - 1, C), bf16)

    @pl.when(tile == 0)
    def _():
        dp_ref[0:1, :, :] = jnp.zeros((1, WPAD, C), bf16)

    @pl.when(tile == last)
    def _():
        dp_ref[TH + 1:TH + 2, :, :] = jnp.zeros((1, WPAD, C), bf16)

    # ---- up_conv3 + residual add ---------------------------------------------
    h1 = bias_prelu(deconv3x3(dp_ref[...], w3_ref, TH), b3, a3)   # (TH, W, F)
    o_ref[0] = (h1 + o_ref[0].astype(f32)).astype(o_ref.dtype)


# -----------------------------------------------------------------------------
# Wrapper.
# -----------------------------------------------------------------------------
def _pick_tile_rows(h, target):
    t = max(1, min(int(target), h))
    while h % t:
        t -= 1
    return t


def _vmem_cap_bytes():
    try:
        return int(pltpu.get_tpu_info().vmem_capacity_bytes)
    except Exception:
        return 128 * 2**20


def up_block(x, w1, b1, a1, w2, b2, a2, w3, b3, a3, *, tile_rows=16):
    """UpBlock forward. x: (N, C, H, W) NCHW -> (N, C, 4H, 4W)."""
    n, c, h, w = x.shape
    f = 16 * c
    trows = _pick_tile_rows(h, tile_rows)
    n_tiles = h // trows
    wpad = ((w + 2 + 7) // 8) * 8          # zero-padded width, sublane-aligned

    # Folded effective weights; bf16 MXU inputs, f32 accumulation in-kernel.
    w1e = _deconv_eff_weight(w1).astype(jnp.bfloat16)            # (9C, 16C)
    w2e = _conv_eff_weight(w2).astype(jnp.bfloat16)              # (16C, 9C)
    w3e = _deconv_eff_weight(w3).astype(jnp.bfloat16)            # (9C, 16C)
    p1 = jnp.stack([jnp.tile(b1, 16), jnp.full((f,), a1)]).astype(jnp.float32)
    p2 = jnp.stack([b2, jnp.full((c,), a2)]).astype(jnp.float32)
    p3 = jnp.stack([jnp.tile(b3, 16), jnp.full((f,), a3)]).astype(jnp.float32)

    # Low-res x: channels-last, 3-row zero halo + aligned column padding.
    # (This is the small low-res tensor; padding it wrapper-side is cheap and
    # removes all in-kernel dynamic boundary handling.)
    x_nhwc = jnp.transpose(x, (0, 2, 3, 1)).astype(jnp.bfloat16)
    xpad = jnp.pad(x_nhwc, ((0, 0), (3, 3), (1, wpad - w - 1), (0, 0)))

    kernel = functools.partial(_upblock_kernel, TH=trows, W=w, WPAD=wpad, C=c)

    def inv_spec(shape):
        # Grid-invariant operand: constant index map + single-buffered, so the
        # pipeline does not allocate a second, never-used VMEM copy.
        return pl.BlockSpec(shape, lambda b, t: (0,) * len(shape),
                            pipeline_mode=pl.Buffered(1))

    # Honest VMEM estimate: only the streamed x / out blocks are double-buffered.
    bf2, f4 = 2, 4
    est = (2 * (h + 6) * wpad * c * bf2            # x block (double-buffered)
           + 2 * trows * w * f * f4                # out block (double-buffered)
           + (w1e.size + w2e.size + w3e.size) * bf2
           + (trows + 4) * wpad * f * bf2          # hp scratch (bf16 h0)
           + (trows + 2) * wpad * c * bf2          # dp scratch (bf16 l0-x)
           + (trows + 4) * w * 9 * c * bf2         # conv1 im2col patch
           + (trows + 4) * w * f * f4              # h0 (transient f32)
           + (trows + 4) * wpad * 9 * c * f4       # conv2 partials (f32)
           + trows * w * 9 * c * bf2               # conv3 im2col patch
           + 2 * trows * w * f * f4)               # h1 + final add temp
    cap = _vmem_cap_bytes()
    vmem_limit = int(min(max(int(1.3 * est), 16 * 2**20),
                         min(100 * 2**20, int(0.85 * cap))))

    flops_tile = 2 * 9 * c * f * ((trows + 4) * w       # up_conv1
                                  + (trows + 4) * wpad  # up_conv2
                                  + trows * w)          # up_conv3
    cost = pl.CostEstimate(
        flops=int(n * n_tiles * flops_tile),
        transcendentals=0,
        bytes_accessed=int(xpad.size * 2 + n * h * w * f * 4
                           + (w1e.size + w2e.size + w3e.size) * 2
                           + (p1.size + p2.size + p3.size) * 4))

    out_block = pl.pallas_call(
        kernel,
        out_shape=jax.ShapeDtypeStruct((n, h, w, f), x.dtype),
        grid_spec=pltpu.PrefetchScalarGridSpec(
            num_scalar_prefetch=0,
            grid=(n, n_tiles),
            in_specs=[
                pl.BlockSpec((1, h + 6, wpad, c), lambda b, t: (b, 0, 0, 0)),
                inv_spec((9 * c, f)),
                inv_spec((f, 9 * c)),
                inv_spec((9 * c, f)),
                inv_spec((2, f)),
                inv_spec((2, c)),
                inv_spec((2, f)),
            ],
            out_specs=pl.BlockSpec((1, trows, w, f), lambda b, t: (b, t, 0, 0)),
            scratch_shapes=[
                pltpu.VMEM((trows + 4, wpad, f), jnp.bfloat16),   # padded h0
                pltpu.VMEM((trows + 2, wpad, c), jnp.bfloat16),   # padded l0-x
            ],
        ),
        compiler_params=pltpu.CompilerParams(
            # batch and row-tile axes are both independent -> megacore-shardable
            dimension_semantics=("parallel", "parallel"),
            vmem_limit_bytes=vmem_limit,
        ),
        cost_estimate=cost,
    )(xpad, w1e, w2e, w3e, p1, p2, p3)

    # Pixel-shuffle the phase-decomposed output back to NCHW (pure layout op).
    # TODO(synk): when this feeds another folded DBPN block, consume the
    # (N, H, W, 16C) phase layout directly instead of materialising NCHW.
    out = out_block.reshape(n, h, w, 4, 4, c)
    return jnp.transpose(out, (0, 5, 1, 3, 2, 4)).reshape(n, c, 4 * h, 4 * w)


# -----------------------------------------------------------------------------
# Pure-JAX reference matching the PyTorch module semantics.
# -----------------------------------------------------------------------------
def _prelu(x, a):
    return jnp.where(x >= 0, x, a * x)


def _conv_transpose_ref(x, w, b):
    # PyTorch ConvTranspose2d(k=8, s=4, p=2); w: (Cin, Cout, 8, 8).
    w_r = jnp.flip(jnp.transpose(w, (1, 0, 2, 3)), axis=(2, 3))
    y = lax.conv_general_dilated(
        x, w_r, window_strides=(1, 1), padding=((5, 5), (5, 5)),
        lhs_dilation=(4, 4), dimension_numbers=("NCHW", "OIHW", "NCHW"))
    return y + b[None, :, None, None]


def _conv_ref(x, w, b):
    # PyTorch Conv2d(k=8, s=4, p=2); w: (Cout, Cin, 8, 8).
    y = lax.conv_general_dilated(
        x, w, window_strides=(4, 4), padding=((2, 2), (2, 2)),
        dimension_numbers=("NCHW", "OIHW", "NCHW"))
    return y + b[None, :, None, None]


def _upblock_ref(x, w1, b1, a1, w2, b2, a2, w3, b3, a3):
    h0 = _prelu(_conv_transpose_ref(x, w1, b1), a1)
    l0 = _prelu(_conv_ref(h0, w2, b2), a2)
    h1 = _prelu(_conv_transpose_ref(l0 - x, w3, b3), a3)
    return h1 + h0


def _run_case(seed, n, c, h, w, tile_rows, tol):
    key = jax.random.PRNGKey(seed)
    ks = jax.random.split(key, 7)
    x = jax.random.normal(ks[0], (n, c, h, w), jnp.float32)
    w1 = jax.random.normal(ks[1], (c, c, 8, 8), jnp.float32) * 0.05  # ConvT (in,out,kh,kw)
    w2 = jax.random.normal(ks[2], (c, c, 8, 8), jnp.float32) * 0.05  # Conv  (out,in,kh,kw)
    w3 = jax.random.normal(ks[3], (c, c, 8, 8), jnp.float32) * 0.05  # ConvT (in,out,kh,kw)
    b1 = jax.random.normal(ks[4], (c,), jnp.float32) * 0.1
    b2 = jax.random.normal(ks[5], (c,), jnp.float32) * 0.1
    b3 = jax.random.normal(ks[6], (c,), jnp.float32) * 0.1
    a1, a2, a3 = 0.25, 0.25, 0.25    # nn.PReLU() default single slope

    out = up_block(x, w1, b1, a1, w2, b2, a2, w3, b3, a3, tile_rows=tile_rows)
    out = jax.block_until_ready(out)
    ref = _upblock_ref(x, w1, b1, a1, w2, b2, a2, w3, b3, a3)
    assert out.shape == (n, c, 4 * h, 4 * w), out.shape
    err = float(jnp.max(jnp.abs(out - ref)))
    assert jnp.allclose(out, ref, atol=tol, rtol=tol), err


if __name__ == "__main__":
    # UpBlock(num_filter, kernel_size=8, stride=4, padding=2, activation=nn.PReLU)
    # Multi-tile path: 4 row tiles (top-edge, two interior, bottom-edge halos).
    _run_case(seed=0, n=2, c=4, h=16, w=16, tile_rows=4, tol=3e-2)
    # Single-tile path (whole image in one tile; both edge masks fire together).
    _run_case(seed=1, n=1, c=8, h=8, w=8, tile_rows=8, tol=3e-2)
    print("KERNEL_OK")
</pallas_src>

<mosaic_0001>
module attributes {stable_mosaic.version = 11 : i64} {
  func.func @_upblock_kernel(%arg0: i32, %arg1: i32, %arg2: memref<1x22x24x4xbf16, #tpu.memory_space<vmem>>, %arg3: memref<36x64xbf16, #tpu.memory_space<vmem>>, %arg4: memref<64x36xbf16, #tpu.memory_space<vmem>>, %arg5: memref<36x64xbf16, #tpu.memory_space<vmem>>, %arg6: memref<2x64xf32, #tpu.memory_space<vmem>>, %arg7: memref<2x4xf32, #tpu.memory_space<vmem>>, %arg8: memref<2x64xf32, #tpu.memory_space<vmem>>, %arg9: memref<1x4x16x64xf32, #tpu.memory_space<vmem>>, %arg10: memref<8x24x64xbf16, #tpu.memory_space<vmem>>, %arg11: memref<6x24x4xbf16, #tpu.memory_space<vmem>>) attributes {dimension_semantics = [#tpu.dimension_semantics<parallel>, #tpu.dimension_semantics<parallel>], iteration_bounds = array<i64: 2, 4>, scalar_prefetch = 0 : i64, scratch_operands = 2 : i64, tpu.core_type = #tpu.core_type<tc>, window_params = [{transform_indices = @transform_0, window_bounds = array<i64: 1, 22, 24, 4>}, {pipeline_mode = #tpu.pipeline_mode<synchronous>, transform_indices = @transform_1, window_bounds = array<i64: 36, 64>}, {pipeline_mode = #tpu.pipeline_mode<synchronous>, transform_indices = @transform_2, window_bounds = array<i64: 64, 36>}, {pipeline_mode = #tpu.pipeline_mode<synchronous>, transform_indices = @transform_3, window_bounds = array<i64: 36, 64>}, {pipeline_mode = #tpu.pipeline_mode<synchronous>, transform_indices = @transform_4, window_bounds = array<i64: 2, 64>}, {pipeline_mode = #tpu.pipeline_mode<synchronous>, transform_indices = @transform_5, window_bounds = array<i64: 2, 4>}, {pipeline_mode = #tpu.pipeline_mode<synchronous>, transform_indices = @transform_6, window_bounds = array<i64: 2, 64>}, {transform_indices = @transform_7, window_bounds = array<i64: 1, 4, 16, 64>}]} {
    %c4_i32 = arith.constant 4 : i32
    %0 = arith.muli %arg1, %c4_i32 : i32
    %1 = tpu.assume_multiple %0, 4 : i32
    %c0 = arith.constant 0 : index
    %c0_0 = arith.constant 0 : index
    %2 = vector.load %arg6[%c0, %c0_0] : memref<2x64xf32, #tpu.memory_space<vmem>>, vector<1x64xf32>
    %3 = vector.shape_cast %2 : vector<1x64xf32> to vector<1x1x64xf32>
    %c1 = arith.constant 1 : index
    %c0_1 = arith.constant 0 : index
    %4 = vector.load %arg6[%c1, %c0_1] : memref<2x64xf32, #tpu.memory_space<vmem>>, vector<1x64xf32>
    %5 = vector.shape_cast %4 : vector<1x64xf32> to vector<1x1x64xf32>
    %c0_2 = arith.constant 0 : index
    %c0_3 = arith.constant 0 : index
    %6 = vector.load %arg7[%c0_2, %c0_3] : memref<2x4xf32, #tpu.memory_space<vmem>>, vector<1x4xf32>
    %7 = vector.shape_cast %6 : vector<1x4xf32> to vector<1x1x4xf32>
    %c1_4 = arith.constant 1 : index
    %c0_5 = arith.constant 0 : index
    %8 = vector.load %arg7[%c1_4, %c0_5] : memref<2x4xf32, #tpu.memory_space<vmem>>, vector<1x4xf32>
    %9 = vector.shape_cast %8 : vector<1x4xf32> to vector<1x1x4xf32>
    %c0_6 = arith.constant 0 : index
    %c0_7 = arith.constant 0 : index
    %10 = vector.load %arg8[%c0_6, %c0_7] : memref<2x64xf32, #tpu.memory_space<vmem>>, vector<1x64xf32>
    %11 = vector.shape_cast %10 : vector<1x64xf32> to vector<1x1x64xf32>
    %c1_8 = arith.constant 1 : index
    %c0_9 = arith.constant 0 : index
    %12 = vector.load %arg8[%c1_8, %c0_9] : memref<2x64xf32, #tpu.memory_space<vmem>>, vector<1x64xf32>
    %13 = vector.shape_cast %12 : vector<1x64xf32> to vector<1x1x64xf32>
    %c0_10 = arith.constant 0 : index
    %14 = arith.index_cast %1 : i32 to index
    %c0_11 = arith.constant 0 : index
    %c0_12 = arith.constant 0 : index
    %15 = vector.load %arg2[%c0_10, %14, %c0_11, %c0_12] : memref<1x22x24x4xbf16, #tpu.memory_space<vmem>>, vector<1x10x24x4xbf16>
    %16 = vector.shape_cast %15 : vector<1x10x24x4xbf16> to vector<10x24x4xbf16>
    %17 = vector.extract_strided_slice %16 {offsets = [0, 0, 0], sizes = [8, 16, 4], strides = [1, 1, 1]} : vector<10x24x4xbf16> to vector<8x16x4xbf16>
    %18 = vector.extract_strided_slice %16 {offsets = [0, 1, 0], sizes = [8, 16, 4], strides = [1, 1, 1]} : vector<10x24x4xbf16> to vector<8x16x4xbf16>
    %19 = vector.extract_strided_slice %16 {offsets = [0, 2, 0], sizes = [8, 16, 4], strides = [1, 1, 1]} : vector<10x24x4xbf16> to vector<8x16x4xbf16>
    %20 = vector.extract_strided_slice %16 {offsets = [1, 0, 0], sizes = [8, 16, 4], strides = [1, 1, 1]} : vector<10x24x4xbf16> to vector<8x16x4xbf16>
    %21 = vector.extract_strided_slice %16 {offsets = [1, 1, 0], sizes = [8, 16, 4], strides = [1, 1, 1]} : vector<10x24x4xbf16> to vector<8x16x4xbf16>
    %22 = vector.extract_strided_slice %16 {offsets = [1, 2, 0], sizes = [8, 16, 4], strides = [1, 1, 1]} : vector<10x24x4xbf16> to vector<8x16x4xbf16>
    %23 = vector.extract_strided_slice %16 {offsets = [2, 0, 0], sizes = [8, 16, 4], strides = [1, 1, 1]} : vector<10x24x4xbf16> to vector<8x16x4xbf16>
    %24 = vector.extract_strided_slice %16 {offsets = [2, 1, 0], sizes = [8, 16, 4], strides = [1, 1, 1]} : vector<10x24x4xbf16> to vector<8x16x4xbf16>
    %25 = vector.extract_strided_slice %16 {offsets = [2, 2, 0], sizes = [8, 16, 4], strides = [1, 1, 1]} : vector<10x24x4xbf16> to vector<8x16x4xbf16>
    %26 = tpu.concatenate %17, %18, %19, %20, %21, %22, %23, %24, %25 in 2 : vector<8x16x4xbf16>, vector<8x16x4xbf16>, vector<8x16x4xbf16>, vector<8x16x4xbf16>, vector<8x16x4xbf16>, vector<8x16x4xbf16>, vector<8x16x4xbf16>, vector<8x16x4xbf16>, vector<8x16x4xbf16> -> vector<8x16x36xbf16>
    %27 = vector.shape_cast %26 : vector<8x16x36xbf16> to vector<128x36xbf16>
    %c0_13 = arith.constant 0 : index
    %c0_14 = arith.constant 0 : index
    %28 = vector.load %arg3[%c0_13, %c0_14] : memref<36x64xbf16, #tpu.memory_space<vmem>>, vector<36x64xbf16>
    %cst = arith.constant dense<0.000000e+00> : vector<128x64xf32>
    %29 = tpu.matmul %27, %28, %cst {dimension_numbers = #tpu.dot_dimension_numbers<[1], [0], [0], [1], [0, 0, 1, 1], [], []>} : vector<128x36xbf16>, vector<36x64xbf16>, vector<128x64xf32> -> vector<128x64xf32>
    %30 = vector.shape_cast %29 : vector<128x64xf32> to vector<8x16x64xf32>
    %31 = vector.broadcast %3 : vector<1x1x64xf32> to vector<8x16x64xf32>
    %32 = arith.addf %30, %31 : vector<8x16x64xf32>
    %cst_15 = arith.constant 0.000000e+00 : f32
    %33 = vector.broadcast %cst_15 : f32 to vector<8x16x64xf32>
    %34 = arith.cmpf oge, %32, %33 : vector<8x16x64xf32>
    %35 = vector.broadcast %5 : vector<1x1x64xf32> to vector<8x16x64xf32>
    %36 = arith.mulf %32, %35 : vector<8x16x64xf32>
    %37 = arith.select %34, %32, %36 : vector<8x16x64xi1>, vector<8x16x64xf32>
    %38 = vector.extract_strided_slice %37 {offsets = [2, 0, 0], sizes = [4, 16, 64], strides = [1, 1, 1]} : vector<8x16x64xf32> to vector<4x16x64xf32>
    %c0_16 = arith.constant 0 : index
    %c0_17 = arith.constant 0 : index
    %c0_18 = arith.constant 0 : index
    %c0_19 = arith.constant 0 : index
    %39 = vector.load %arg9[%c0_16, %c0_17, %c0_18, %c0_19] : memref<1x4x16x64xf32, #tpu.memory_space<vmem>>, vector<1x4x16x64xf32>
    %40 = vector.shape_cast %39 : vector<1x4x16x64xf32> to vector<4x16x64xf32>
    %41 = vector.shape_cast %38 : vector<4x16x64xf32> to vector<1x4x16x64xf32>
    tpu.vector_store %arg9[%c0_16, %c0_17, %c0_18, %c0_19], %41 {strides = array<i32>} : memref<1x4x16x64xf32, #tpu.memory_space<vmem>>, vector<1x4x16x64xf32>,
    %42 = arith.truncf %37 : vector<8x16x64xf32> to vector<8x16x64xbf16>
    %c0_20 = arith.constant 0 : index
    %c1_21 = arith.constant 1 : index
    %c0_22 = arith.constant 0 : index
    %43 = vector.load %arg10[%c0_20, %c1_21, %c0_22] : memref<8x24x64xbf16, #tpu.memory_space<vmem>>, vector<8x16x64xbf16>
    tpu.vector_store %arg10[%c0_20, %c1_21, %c0_22], %42 {strides = array<i32>} : memref<8x24x64xbf16, #tpu.memory_space<vmem>>, vector<8x16x64xbf16>,
    %cst_23 = arith.constant 0.000000e+00 : bf16
    %44 = vector.broadcast %cst_23 : bf16 to vector<8x1x64xbf16>
    %c0_24 = arith.constant 0 : index
    %c0_25 = arith.constant 0 : index
    %c0_26 = arith.constant 0 : index
    %45 = vector.load %arg10[%c0_24, %c0_25, %c0_26] : memref<8x24x64xbf16, #tpu.memory_space<vmem>>, vector<8x1x64xbf16>
    tpu.vector_store %arg10[%c0_24, %c0_25, %c0_26], %44 {strides = array<i32>} : memref<8x24x64xbf16, #tpu.memory_space<vmem>>, vector<8x1x64xbf16>,
    %cst_27 = arith.constant 0.000000e+00 : bf16
    %46 = vector.broadcast %cst_27 : bf16 to vector<8x7x64xbf16>
    %c0_28 = arith.constant 0 : index
    %c17 = arith.constant 17 : index
    %c0_29 = arith.constant 0 : index
    %47 = vector.load %arg10[%c0_28, %c17, %c0_29] : memref<8x24x64xbf16, #tpu.memory_space<vmem>>, vector<8x7x64xbf16>
    tpu.vector_store %arg10[%c0_28, %c17, %c0_29], %46 {strides = array<i32>} : memref<8x24x64xbf16, #tpu.memory_space<vmem>>, vector<8x7x64xbf16>,
    %c0_i32 = arith.constant 0 : i32
    %48 = arith.cmpi eq, %arg1, %c0_i32 : i32
    %49 = arith.extui %48 : i1 to i32
    %c0_i32_30 = arith.constant 0 : i32
    %50 = arith.cmpi ne, %49, %c0_i32_30 : i32
    scf.if %50 {
      %cst_69 = arith.constant 0.000000e+00 : bf16
      %126 = vector.broadcast %cst_69 : bf16 to vector<2x24x64xbf16>
      %c0_70 = arith.constant 0 : index
      %c0_71 = arith.constant 0 : index
      %c0_72 = arith.constant 0 : index
      %127 = vector.load %arg10[%c0_70, %c0_71, %c0_72] : memref<8x24x64xbf16, #tpu.memory_space<vmem>>, vector<2x24x64xbf16>
      tpu.vector_store %arg10[%c0_70, %c0_71, %c0_72], %126 {strides = array<i32>} : memref<8x24x64xbf16, #tpu.memory_space<vmem>>, vector<2x24x64xbf16>,
    } else {
    }
    %c3_i32 = arith.constant 3 : i32
    %51 = arith.cmpi eq, %arg1, %c3_i32 : i32
    %52 = arith.extui %51 : i1 to i32
    %c0_i32_31 = arith.constant 0 : i32
    %53 = arith.cmpi ne, %52, %c0_i32_31 : i32
    scf.if %53 {
      %cst_69 = arith.constant 0.000000e+00 : bf16
      %126 = vector.broadcast %cst_69 : bf16 to vector<2x24x64xbf16>
      %c6 = arith.constant 6 : index
      %c0_70 = arith.constant 0 : index
      %c0_71 = arith.constant 0 : index
      %127 = vector.load %arg10[%c6, %c0_70, %c0_71] : memref<8x24x64xbf16, #tpu.memory_space<vmem>>, vector<2x24x64xbf16>
      tpu.vector_store %arg10[%c6, %c0_70, %c0_71], %126 {strides = array<i32>} : memref<8x24x64xbf16, #tpu.memory_space<vmem>>, vector<2x24x64xbf16>,
    } else {
    }
    %c0_32 = arith.constant 0 : index
    %c0_33 = arith.constant 0 : index
    %c0_34 = arith.constant 0 : index
    %54 = vector.load %arg10[%c0_32, %c0_33, %c0_34] : memref<8x24x64xbf16, #tpu.memory_space<vmem>>, vector<8x24x64xbf16>
    %55 = vector.shape_cast %54 : vector<8x24x64xbf16> to vector<192x64xbf16>
    %c0_35 = arith.constant 0 : index
    %c0_36 = arith.constant 0 : index
    %56 = vector.load %arg4[%c0_35, %c0_36] : memref<64x36xbf16, #tpu.memory_space<vmem>>, vector<64x36xbf16>
    %cst_37 = arith.constant dense<0.000000e+00> : vector<192x36xf32>
    %57 = tpu.matmul %55, %56, %cst_37 {dimension_numbers = #tpu.dot_dimension_numbers<[1], [0], [0], [1], [0, 0, 1, 1], [], []>} : vector<192x64xbf16>, vector<64x36xbf16>, vector<192x36xf32> -> vector<192x36xf32>
    %58 = vector.shape_cast %57 : vector<192x36xf32> to vector<8x24x36xf32>
    %59 = vector.extract_strided_slice %58 {offsets = [0, 0, 0], sizes = [6, 16, 4], strides = [1, 1, 1]} : vector<8x24x36xf32> to vector<6x16x4xf32>
    %60 = vector.extract_strided_slice %58 {offsets = [0, 1, 4], sizes = [6, 16, 4], strides = [1, 1, 1]} : vector<8x24x36xf32> to vector<6x16x4xf32>
    %61 = vector.extract_strided_slice %58 {offsets = [0, 2, 8], sizes = [6, 16, 4], strides = [1, 1, 1]} : vector<8x24x36xf32> to vector<6x16x4xf32>
    %62 = vector.extract_strided_slice %58 {offsets = [1, 0, 12], sizes = [6, 16, 4], strides = [1, 1, 1]} : vector<8x24x36xf32> to vector<6x16x4xf32>
    %63 = vector.extract_strided_slice %58 {offsets = [1, 1, 16], sizes = [6, 16, 4], strides = [1, 1, 1]} : vector<8x24x36xf32> to vector<6x16x4xf32>
    %64 = vector.extract_strided_slice %58 {offsets = [1, 2, 20], sizes = [6, 16, 4], strides = [1, 1, 1]} : vector<8x24x36xf32> to vector<6x16x4xf32>
    %65 = vector.extract_strided_slice %58 {offsets = [2, 0, 24], sizes = [6, 16, 4], strides = [1, 1, 1]} : vector<8x24x36xf32> to vector<6x16x4xf32>
    %66 = vector.extract_strided_slice %58 {offsets = [2, 1, 28], sizes = [6, 16, 4], strides = [1, 1, 1]} : vector<8x24x36xf32> to vector<6x16x4xf32>
    %67 = vector.extract_strided_slice %58 {offsets = [2, 2, 32], sizes = [6, 16, 4], strides = [1, 1, 1]} : vector<8x24x36xf32> to vector<6x16x4xf32>
    %68 = arith.addf %59, %60 : vector<6x16x4xf32>
    %69 = arith.addf %68, %61 : vector<6x16x4xf32>
    %70 = arith.addf %69, %62 : vector<6x16x4xf32>
    %71 = arith.addf %70, %63 : vector<6x16x4xf32>
    %72 = arith.addf %71, %64 : vector<6x16x4xf32>
    %73 = arith.addf %72, %65 : vector<6x16x4xf32>
    %74 = arith.addf %73, %66 : vector<6x16x4xf32>
    %75 = arith.addf %74, %67 : vector<6x16x4xf32>
    %76 = vector.broadcast %7 : vector<1x1x4xf32> to vector<6x16x4xf32>
    %77 = arith.addf %75, %76 : vector<6x16x4xf32>
    %cst_38 = arith.constant 0.000000e+00 : f32
    %78 = vector.broadcast %cst_38 : f32 to vector<6x16x4xf32>
    %79 = arith.cmpf oge, %77, %78 : vector<6x16x4xf32>
    %80 = vector.broadcast %9 : vector<1x1x4xf32> to vector<6x16x4xf32>
    %81 = arith.mulf %77, %80 : vector<6x16x4xf32>
    %82 = arith.select %79, %77, %81 : vector<6x16x4xi1>, vector<6x16x4xf32>
    %83 = vector.extract_strided_slice %16 {offsets = [2, 1, 0], sizes = [6, 16, 4], strides = [1, 1, 1]} : vector<10x24x4xbf16> to vector<6x16x4xbf16>
    %84 = arith.extf %83 : vector<6x16x4xbf16> to vector<6x16x4xf32>
    %85 = arith.subf %82, %84 : vector<6x16x4xf32>
    %86 = arith.truncf %85 : vector<6x16x4xf32> to vector<6x16x4xbf16>
    %c0_39 = arith.constant 0 : index
    %c1_40 = arith.constant 1 : index
    %c0_41 = arith.constant 0 : index
    %87 = vector.load %arg11[%c0_39, %c1_40, %c0_41] : memref<6x24x4xbf16, #tpu.memory_space<vmem>>, vector<6x16x4xbf16>
    tpu.vector_store %arg11[%c0_39, %c1_40, %c0_41], %86 {strides = array<i32>} : memref<6x24x4xbf16, #tpu.memory_space<vmem>>, vector<6x16x4xbf16>,
    %cst_42 = arith.constant 0.000000e+00 : bf16
    %88 = vector.broadcast %cst_42 : bf16 to vector<6x1x4xbf16>
    %c0_43 = arith.constant 0 : index
    %c0_44 = arith.constant 0 : index
    %c0_45 = arith.constant 0 : index
    %89 = vector.load %arg11[%c0_43, %c0_44, %c0_45] : memref<6x24x4xbf16, #tpu.memory_space<vmem>>, vector<6x1x4xbf16>
    tpu.vector_store %arg11[%c0_43, %c0_44, %c0_45], %88 {strides = array<i32>} : memref<6x24x4xbf16, #tpu.memory_space<vmem>>, vector<6x1x4xbf16>,
    %cst_46 = arith.constant 0.000000e+00 : bf16
    %90 = vector.broadcast %cst_46 : bf16 to vector<6x7x4xbf16>
    %c0_47 = arith.constant 0 : index
    %c17_48 = arith.constant 17 : index
    %c0_49 = arith.constant 0 : index
    %91 = vector.load %arg11[%c0_47, %c17_48, %c0_49] : memref<6x24x4xbf16, #tpu.memory_space<vmem>>, vector<6x7x4xbf16>
    tpu.vector_store %arg11[%c0_47, %c17_48, %c0_49], %90 {strides = array<i32>} : memref<6x24x4xbf16, #tpu.memory_space<vmem>>, vector<6x7x4xbf16>,
    %c0_i32_50 = arith.constant 0 : i32
    %92 = arith.cmpi eq, %arg1, %c0_i32_50 : i32
    %93 = arith.extui %92 : i1 to i32
    %c0_i32_51 = arith.constant 0 : i32
    %94 = arith.cmpi ne, %93, %c0_i32_51 : i32
    scf.if %94 {
      %cst_69 = arith.constant 0.000000e+00 : bf16
      %126 = vector.broadcast %cst_69 : bf16 to vector<1x24x4xbf16>
      %c0_70 = arith.constant 0 : index
      %c0_71 = arith.constant 0 : index
      %c0_72 = arith.constant 0 : index
      %127 = vector.load %arg11[%c0_70, %c0_71, %c0_72] : memref<6x24x4xbf16, #tpu.memory_space<vmem>>, vector<1x24x4xbf16>
      tpu.vector_store %arg11[%c0_70, %c0_71, %c0_72], %126 {strides = array<i32>} : memref<6x24x4xbf16, #tpu.memory_space<vmem>>, vector<1x24x4xbf16>,
    } else {
    }
    %c3_i32_52 = arith.constant 3 : i32
    %95 = arith.cmpi eq, %arg1, %c3_i32_52 : i32
    %96 = arith.extui %95 : i1 to i32
    %c0_i32_53 = arith.constant 0 : i32
    %97 = arith.cmpi ne, %96, %c0_i32_53 : i32
    scf.if %97 {
      %cst_69 = arith.constant 0.000000e+00 : bf16
      %126 = vector.broadcast %cst_69 : bf16 to vector<1x24x4xbf16>
      %c5 = arith.constant 5 : index
      %c0_70 = arith.constant 0 : index
      %c0_71 = arith.constant 0 : index
      %127 = vector.load %arg11[%c5, %c0_70, %c0_71] : memref<6x24x4xbf16, #tpu.memory_space<vmem>>, vector<1x24x4xbf16>
      tpu.vector_store %arg11[%c5, %c0_70, %c0_71], %126 {strides = array<i32>} : memref<6x24x4xbf16, #tpu.memory_space<vmem>>, vector<1x24x4xbf16>,
    } else {
    }
    %c0_54 = arith.constant 0 : index
    %c0_55 = arith.constant 0 : index
    %c0_56 = arith.constant 0 : index
    %98 = vector.load %arg11[%c0_54, %c0_55, %c0_56] : memref<6x24x4xbf16, #tpu.memory_space<vmem>>, vector<6x24x4xbf16>
    %99 = vector.extract_strided_slice %98 {offsets = [0, 0, 0], sizes = [4, 16, 4], strides = [1, 1, 1]} : vector<6x24x4xbf16> to vector<4x16x4xbf16>
    %100 = vector.extract_strided_slice %98 {offsets = [0, 1, 0], sizes = [4, 16, 4], strides = [1, 1, 1]} : vector<6x24x4xbf16> to vector<4x16x4xbf16>
    %101 = vector.extract_strided_slice %98 {offsets = [0, 2, 0], sizes = [4, 16, 4], strides = [1, 1, 1]} : vector<6x24x4xbf16> to vector<4x16x4xbf16>
    %102 = vector.extract_strided_slice %98 {offsets = [1, 0, 0], sizes = [4, 16, 4], strides = [1, 1, 1]} : vector<6x24x4xbf16> to vector<4x16x4xbf16>
    %103 = vector.extract_strided_slice %98 {offsets = [1, 1, 0], sizes = [4, 16, 4], strides = [1, 1, 1]} : vector<6x24x4xbf16> to vector<4x16x4xbf16>
    %104 = vector.extract_strided_slice %98 {offsets = [1, 2, 0], sizes = [4, 16, 4], strides = [1, 1, 1]} : vector<6x24x4xbf16> to vector<4x16x4xbf16>
    %105 = vector.extract_strided_slice %98 {offsets = [2, 0, 0], sizes = [4, 16, 4], strides = [1, 1, 1]} : vector<6x24x4xbf16> to vector<4x16x4xbf16>
    %106 = vector.extract_strided_slice %98 {offsets = [2, 1, 0], sizes = [4, 16, 4], strides = [1, 1, 1]} : vector<6x24x4xbf16> to vector<4x16x4xbf16>
    %107 = vector.extract_strided_slice %98 {offsets = [2, 2, 0], sizes = [4, 16, 4], strides = [1, 1, 1]} : vector<6x24x4xbf16> to vector<4x16x4xbf16>
    %108 = tpu.concatenate %99, %100, %101, %102, %103, %104, %105, %106, %107 in 2 : vector<4x16x4xbf16>, vector<4x16x4xbf16>, vector<4x16x4xbf16>, vector<4x16x4xbf16>, vector<4x16x4xbf16>, vector<4x16x4xbf16>, vector<4x16x4xbf16>, vector<4x16x4xbf16>, vector<4x16x4xbf16> -> vector<4x16x36xbf16>
    %109 = vector.shape_cast %108 : vector<4x16x36xbf16> to vector<64x36xbf16>
    %c0_57 = arith.constant 0 : index
    %c0_58 = arith.constant 0 : index
    %110 = vector.load %arg5[%c0_57, %c0_58] : memref<36x64xbf16, #tpu.memory_space<vmem>>, vector<36x64xbf16>
    %cst_59 = arith.constant dense<0.000000e+00> : vector<64x64xf32>
    %111 = tpu.matmul %109, %110, %cst_59 {dimension_numbers = #tpu.dot_dimension_numbers<[1], [0], [0], [1], [0, 0, 1, 1], [], []>} : vector<64x36xbf16>, vector<36x64xbf16>, vector<64x64xf32> -> vector<64x64xf32>
    %112 = vector.shape_cast %111 : vector<64x64xf32> to vector<4x16x64xf32>
    %113 = vector.broadcast %11 : vector<1x1x64xf32> to vector<4x16x64xf32>
    %114 = arith.addf %112, %113 : vector<4x16x64xf32>
    %cst_60 = arith.constant 0.000000e+00 : f32
    %115 = vector.broadcast %cst_60 : f32 to vector<4x16x64xf32>
    %116 = arith.cmpf oge, %114, %115 : vector<4x16x64xf32>
    %117 = vector.broadcast %13 : vector<1x1x64xf32> to vector<4x16x64xf32>
    %118 = arith.mulf %114, %117 : vector<4x16x64xf32>
    %119 = arith.select %116, %114, %118 : vector<4x16x64xi1>, vector<4x16x64xf32>
    %c0_61 = arith.constant 0 : index
    %c0_62 = arith.constant 0 : index
    %c0_63 = arith.constant 0 : index
    %c0_64 = arith.constant 0 : index
    %120 = vector.load %arg9[%c0_61, %c0_62, %c0_63, %c0_64] : memref<1x4x16x64xf32, #tpu.memory_space<vmem>>, vector<1x4x16x64xf32>
    %121 = vector.shape_cast %120 : vector<1x4x16x64xf32> to vector<4x16x64xf32>
    %122 = arith.addf %119, %121 : vector<4x16x64xf32>
    %c0_65 = arith.constant 0 : index
    %c0_66 = arith.constant 0 : index
    %c0_67 = arith.constant 0 : index
    %c0_68 = arith.constant 0 : index
    %123 = vector.load %arg9[%c0_65, %c0_66, %c0_67, %c0_68] : memref<1x4x16x64xf32, #tpu.memory_space<vmem>>, vector<1x4x16x64xf32>
    %124 = vector.shape_cast %123 : vector<1x4x16x64xf32> to vector<4x16x64xf32>
    %125 = vector.shape_cast %122 : vector<4x16x64xf32> to vector<1x4x16x64xf32>
    tpu.vector_store %arg9[%c0_65, %c0_66, %c0_67, %c0_68], %125 {strides = array<i32>} : memref<1x4x16x64xf32, #tpu.memory_space<vmem>>, vector<1x4x16x64xf32>,
    return
  }
  func.func @transform_0(%arg0: i32, %arg1: i32) -> (i32, i32, i32, i32) {
    %c0_i32 = arith.constant 0 : i32
    %c0_i32_0 = arith.constant 0 : i32
    %c0_i32_1 = arith.constant 0 : i32
    %c0_i32_2 = arith.constant 0 : i32
    return %arg0, %c0_i32, %c0_i32_0, %c0_i32_1 : i32, i32, i32, i32
  }
  func.func @transform_1(%arg0: i32, %arg1: i32) -> (i32, i32) {
    %c0_i32 = arith.constant 0 : i32
    %c0_i32_0 = arith.constant 0 : i32
    %c0_i32_1 = arith.constant 0 : i32
    return %c0_i32, %c0_i32_0 : i32, i32
  }
  func.func @transform_2(%arg0: i32, %arg1: i32) -> (i32, i32) {
    %c0_i32 = arith.constant 0 : i32
    %c0_i32_0 = arith.constant 0 : i32
    %c0_i32_1 = arith.constant 0 : i32
    return %c0_i32, %c0_i32_0 : i32, i32
  }
  func.func @transform_3(%arg0: i32, %arg1: i32) -> (i32, i32) {
    %c0_i32 = arith.constant 0 : i32
    %c0_i32_0 = arith.constant 0 : i32
    %c0_i32_1 = arith.constant 0 : i32
    return %c0_i32, %c0_i32_0 : i32, i32
  }
  func.func @transform_4(%arg0: i32, %arg1: i32) -> (i32, i32) {
    %c0_i32 = arith.constant 0 : i32
    %c0_i32_0 = arith.constant 0 : i32
    %c0_i32_1 = arith.constant 0 : i32
    return %c0_i32, %c0_i32_0 : i32, i32
  }
  func.func @transform_5(%arg0: i32, %arg1: i32) -> (i32, i32) {
    %c0_i32 = arith.constant 0 : i32
    %c0_i32_0 = arith.constant 0 : i32
    %c0_i32_1 = arith.constant 0 : i32
    return %c0_i32, %c0_i32_0 : i32, i32
  }
  func.func @transform_6(%arg0: i32, %arg1: i32) -> (i32, i32) {
    %c0_i32 = arith.constant 0 : i32
    %c0_i32_0 = arith.constant 0 : i32
    %c0_i32_1 = arith.constant 0 : i32
    return %c0_i32, %c0_i32_0 : i32, i32
  }
  func.func @transform_7(%arg0: i32, %arg1: i32) -> (i32, i32, i32, i32) {
    %c0_i32 = arith.constant 0 : i32
    %c0_i32_0 = arith.constant 0 : i32
    %c0_i32_1 = arith.constant 0 : i32
    return %arg0, %arg1, %c0_i32, %c0_i32_0 : i32, i32, i32, i32
  }
}

</mosaic_0001>

<llo_original>
// kernel: tpu_custom_call.1
$region0: #{tpu_custom_call.1}
  #allocation0 [shape = 'u32[]', space=smem, size = 0x4, offset = 0x4, fixed_abs, tag = 'smem constant byte address 0x4 - core index']
  #allocation1 [shape = 'u32[144,128]{1,0:T(1,128)}', space=vmem, size = 0x12000, scoped, tag = 'internal scratch']
  #allocation2 [shape = 'bf16[8,24,64]{2,1,0:T(8,128)(2,1)}', space=vmem, size = 0xc000, scoped, tag = 'scratch operand']
  #allocation3 [shape = 'bf16[6,24,4]{2,1,0:T(8,128)(2,1)}', space=vmem, size = 0x9000, scoped, tag = 'scratch operand']
  %s0 = inlined_call_operand.vmem [shape: bf16[2,22,24,4], index: 0, kind: input, shape index: {}]
  %s1 = inlined_call_operand.vmem [shape: bf16[36,64], index: 1, kind: input, shape index: {}]
  %s2 = inlined_call_operand.vmem [shape: bf16[64,36], index: 2, kind: input, shape index: {}]
  %s3 = inlined_call_operand.vmem [shape: bf16[36,64], index: 3, kind: input, shape index: {}]
  %s4 = inlined_call_operand.vmem [shape: f32[2,64], index: 4, kind: input, shape index: {}]
  %s5 = inlined_call_operand.vmem [shape: f32[2,4], index: 5, kind: input, shape index: {}]
  %s6 = inlined_call_operand.vmem [shape: f32[2,64], index: 6, kind: input, shape index: {}]
  %s7 = inlined_call_operand.hbm [shape: f32[2,16,16,64], index: 7, kind: output, shape index: {}]
  %s8 = sld [smem:[#allocation0]]
  $region77: #{tpu_custom_call.1} parent=0
    _
  %s10 = ssub.s32 1, %s8
  %s11 = scalar_select 0, %s10, %s8
  $region1: #{tpu_custom_call.1} parent=0
    #allocation4 [shape = 'u8[65536]{0}', space=vmem, size = 0x10000, scoped, tag = 'output window, operand 0']
    #allocation5 [shape = 's32[2]{0}', space=sflag, size = 0x8, scoped, tag = 'scoped memory for tpu_custom_call.1']
    %12 = vsyncpa [#allocation5], 0
    %s13 = scalar_lea.sflag [#allocation5], 1
    %14 = vsyncpa %s13, 0
    loop: start=0, step=1, limit=10
    $region2: #{tpu_custom_call.1} parent=1 // loop_pre_header
      _
    $region3: #{tpu_custom_call.1} parent=1 // loop_header
      %s16 = sphi 0, %s20
      %p17 = scmp.ge.s32.totalorder %s16, 10
      %s23 = sphi 0, %s35
      %s24 = sphi 0, %s31
      %s25 = sphi 0, %s23
      %s26 = sphi 0, %s24
      %s27 = sphi 0, %s25
      %s28 = sphi 0, %s26
      %s38 = sphi 0, %s40
      %s41 = sphi 0, %s38
      %s42 = sphi 0, %s41
      %s58 = sphi 0, %s42
      %s62 = sphi 0, %s62
      %s64 = sphi 0, %s62
      %s65 = sphi 0, %s64
      %s79 = sphi 0, %s65
      %s83 = sphi 0, %s83
      %s85 = sphi 0, %s83
      %s86 = sphi 0, %s85
      %s100 = sphi 0, %s86
      %s104 = sphi 0, %s104
      %s106 = sphi 0, %s104
      %s107 = sphi 0, %s106
      %s121 = sphi 0, %s107
      %s125 = sphi 0, %s125
      %s127 = sphi 0, %s125
      %s128 = sphi 0, %s127
      %s142 = sphi 0, %s128
      %s146 = sphi 0, %s146
      %s148 = sphi 0, %s146
      %s149 = sphi 0, %s148
      %s163 = sphi 0, %s149
      %s167 = sphi 0, %s167
      %s169 = sphi 0, %s167
      %s170 = sphi 0, %s169
      %s184 = sphi 0, %s170
      %s192 = sphi 0, %s194
      %s195 = sphi 0, %s192
      %s196 = sphi 0, %s195
      %s212 = sphi 0, %s196
    $region4: #{tpu_custom_call.1} parent=1 // loop_header_branch
      %19 = sbr.rel (%p17) target = $region8
    $region5: #{tpu_custom_call.1} parent=1 // loop_body
      %s21 = ssub.s32 %s16, 1
      %s22 = ssub.s32 %s16, 2
      %s29 = sadd.s32 1, %s24
      %p30 = scmp.ge.s32.totalorder %s29, 4
      %s31 = scalar_select %p30, 0, %s29
      %s32 = sadd.s32 1, %s23
      %s33 = scalar_select %p30, %s32, %s23
      %p34 = scmp.ge.s32.totalorder %s33, 2
      %s35 = scalar_select %p34, 0, %s33
      %s36 = ssub.s32 %s23, %s35
      %p37 = scmp.eq.s32.totalorder %s36, 0
      %s39 = sadd.s32 %s38, 1
      %s40 = scalar_select %p37, %s38, %s39
      %p43 = pneg %p37
      %p44 = scmp.eq.s32.totalorder %s16, 7
      %p45 = por %p43, %p44
      %p46 = scmp.ne.s32.totalorder %s38, %s41
      %p47 = scmp.eq.s32.totalorder %s16, 0
      %p48 = por %p46, %p47
      %p49 = scmp.ne.s32.totalorder %s38, %s41
      %p50 = scmp.eq.s32.totalorder %s21, 7
      %p51 = por %p49, %p50
      %p52 = scmp.ne.s32.totalorder %s41, %s42
      %p53 = scmp.eq.s32.totalorder %s21, 0
      %p54 = por %p52, %p53
      %p55 = scmp.ne.s32.totalorder %s41, %s42
      %p56 = scmp.eq.s32.totalorder %s22, 7
      %p57 = por %p55, %p56
      %p59 = scmp.ne.s32.totalorder %s42, %s58
      %p60 = scmp.eq.s32.totalorder %s22, 0
      %p61 = por %p59, %p60
      %s63 = sadd.s32 %s62, 1
      %p66 = scmp.eq.s32.totalorder %s16, 7
      %p67 = scmp.ne.s32.totalorder %s62, %s64
      %p68 = scmp.eq.s32.totalorder %s16, 0
      %p69 = por %p67, %p68
      %p70 = scmp.ne.s32.totalorder %s62, %s64
      %p71 = scmp.eq.s32.totalorder %s21, 7
      %p72 = por %p70, %p71
      %p73 = scmp.ne.s32.totalorder %s64, %s65
      %p74 = scmp.eq.s32.totalorder %s21, 0
      %p75 = por %p73, %p74
      %p76 = scmp.ne.s32.totalorder %s64, %s65
      %p77 = scmp.eq.s32.totalorder %s22, 7
      %p78 = por %p76, %p77
      %p80 = scmp.ne.s32.totalorder %s65, %s79
      %p81 = scmp.eq.s32.totalorder %s22, 0
      %p82 = por %p80, %p81
      %s84 = sadd.s32 %s83, 1
      %p87 = scmp.eq.s32.totalorder %s16, 7
      %p88 = scmp.ne.s32.totalorder %s83, %s85
      %p89 = scmp.eq.s32.totalorder %s16, 0
      %p90 = por %p88, %p89
      %p91 = scmp.ne.s32.totalorder %s83, %s85
      %p92 = scmp.eq.s32.totalorder %s21, 7
      %p93 = por %p91, %p92
      %p94 = scmp.ne.s32.totalorder %s85, %s86
      %p95 = scmp.eq.s32.totalorder %s21, 0
      %p96 = por %p94, %p95
      %p97 = scmp.ne.s32.totalorder %s85, %s86
      %p98 = scmp.eq.s32.totalorder %s22, 7
      %p99 = por %p97, %p98
      %p101 = scmp.ne.s32.totalorder %s86, %s100
      %p102 = scmp.eq.s32.totalorder %s22, 0
      %p103 = por %p101, %p102
      %s105 = sadd.s32 %s104, 1
      %p108 = scmp.eq.s32.totalorder %s16, 7
      %p109 = scmp.ne.s32.totalorder %s104, %s106
      %p110 = scmp.eq.s32.totalorder %s16, 0
      %p111 = por %p109, %p110
      %p112 = scmp.ne.s32.totalorder %s104, %s106
      %p113 = scmp.eq.s32.totalorder %s21, 7
      %p114 = por %p112, %p113
      %p115 = scmp.ne.s32.totalorder %s106, %s107
      %p116 = scmp.eq.s32.totalorder %s21, 0
      %p117 = por %p115, %p116
      %p118 = scmp.ne.s32.totalorder %s106, %s107
      %p119 = scmp.eq.s32.totalorder %s22, 7
      %p120 = por %p118, %p119
      %p122 = scmp.ne.s32.totalorder %s107, %s121
      %p123 = scmp.eq.s32.totalorder %s22, 0
      %p124 = por %p122, %p123
      %s126 = sadd.s32 %s125, 1
      %p129 = scmp.eq.s32.totalorder %s16, 7
      %p130 = scmp.ne.s32.totalorder %s125, %s127
      %p131 = scmp.eq.s32.totalorder %s16, 0
      %p132 = por %p130, %p131
      %p133 = scmp.ne.s32.totalorder %s125, %s127
      %p134 = scmp.eq.s32.totalorder %s21, 7
      %p135 = por %p133, %p134
      %p136 = scmp.ne.s32.totalorder %s127, %s128
      %p137 = scmp.eq.s32.totalorder %s21, 0
      %p138 = por %p136, %p137
      %p139 = scmp.ne.s32.totalorder %s127, %s128
      %p140 = scmp.eq.s32.totalorder %s22, 7
      %p141 = por %p139, %p140
      %p143 = scmp.ne.s32.totalorder %s128, %s142
      %p144 = scmp.eq.s32.totalorder %s22, 0
      %p145 = por %p143, %p144
      %s147 = sadd.s32 %s146, 1
      %p150 = scmp.eq.s32.totalorder %s16, 7
      %p151 = scmp.ne.s32.totalorder %s146, %s148
      %p152 = scmp.eq.s32.totalorder %s16, 0
      %p153 = por %p151, %p152
      %p154 = scmp.ne.s32.totalorder %s146, %s148
      %p155 = scmp.eq.s32.totalorder %s21, 7
      %p156 = por %p154, %p155
      %p157 = scmp.ne.s32.totalorder %s148, %s149
      %p158 = scmp.eq.s32.totalorder %s21, 0
      %p159 = por %p157, %p158
      %p160 = scmp.ne.s32.totalorder %s148, %s149
      %p161 = scmp.eq.s32.totalorder %s22, 7
      %p162 = por %p160, %p161
      %p164 = scmp.ne.s32.totalorder %s149, %s163
      %p165 = scmp.eq.s32.totalorder %s22, 0
      %p166 = por %p164, %p165
      %s168 = sadd.s32 %s167, 1
      %p171 = scmp.eq.s32.totalorder %s16, 7
      %p172 = scmp.ne.s32.totalorder %s167, %s169
      %p173 = scmp.eq.s32.totalorder %s16, 0
      %p174 = por %p172, %p173
      %p175 = scmp.ne.s32.totalorder %s167, %s169
      %p176 = scmp.eq.s32.totalorder %s21, 7
      %p177 = por %p175, %p176
      %p178 = scmp.ne.s32.totalorder %s169, %s170
      %p179 = scmp.eq.s32.totalorder %s21, 0
      %p180 = por %p178, %p179
      %p181 = scmp.ne.s32.totalorder %s169, %s170
      %p182 = scmp.eq.s32.totalorder %s22, 7
      %p183 = por %p181, %p182
      %p185 = scmp.ne.s32.totalorder %s170, %s184
      %p186 = scmp.eq.s32.totalorder %s22, 0
      %p187 = por %p185, %p186
      %s188 = ssub.s32 %s23, %s35
      %s189 = ssub.s32 %s24, %s31
      %s190 = sor.u32 %s188, %s189
      %p191 = scmp.eq.s32.totalorder %s190, 0
      %s193 = sadd.s32 %s192, 1
      %s194 = scalar_select %p191, %s192, %s193
      %p197 = pneg %p191
      %p198 = scmp.eq.s32.totalorder %s16, 7
      %p199 = por %p197, %p198
      %p200 = scmp.ne.s32.totalorder %s192, %s195
      %p201 = scmp.eq.s32.totalorder %s16, 0
      %p202 = por %p200, %p201
      %p203 = scmp.ne.s32.totalorder %s192, %s195
      %p204 = scmp.eq.s32.totalorder %s21, 7
      %p205 = por %p203, %p204
      %p206 = scmp.ne.s32.totalorder %s195, %s196
      %p207 = scmp.eq.s32.totalorder %s21, 0
      %p208 = por %p206, %p207
      %p209 = scmp.ne.s32.totalorder %s195, %s196
      %p210 = scmp.eq.s32.totalorder %s22, 7
      %p211 = por %p209, %p210
      %p213 = scmp.ne.s32.totalorder %s196, %s212
      %p214 = scmp.eq.s32.totalorder %s22, 0
      %p215 = por %p213, %p214
      %p216 = scmp.le.s32.totalorder 1, %s16
      %p217 = scmp.lt.s32.totalorder %s16, 9
      %p218 = pnand %p216, %p217
      %p219 = pneg %p218
      // Predicated region
      $region9: #{tpu_custom_call.1} parent=5 // pred_check
        _
      $region10: #{tpu_custom_call.1} parent=5 // pred_check_branch
        %221 = sbr.rel (%p218) target = $region12
      $region11: #{tpu_custom_call.1} parent=5 // pred_region
        %s222 = ssub.s32 %s16, 1
        // Predicated region
        $region13: #{tpu_custom_call.1} parent=11 // pred_check
          %p223 = pneg %p75
        $region14: #{tpu_custom_call.1} parent=11 // pred_check_branch
          %225 = sbr.rel (%p223) target = $region16
        $region15: #{tpu_custom_call.1} parent=11 // pred_region
          _
        $region16: #{tpu_custom_call.1} parent=11 // pred_fallthru
          _
        // Predicated region
        $region17: #{tpu_custom_call.1} parent=11 // pred_check
          %p226 = pneg %p96
        $region18: #{tpu_custom_call.1} parent=11 // pred_check_branch
          %228 = sbr.rel (%p226) target = $region20
        $region19: #{tpu_custom_call.1} parent=11 // pred_region
          _
        $region20: #{tpu_custom_call.1} parent=11 // pred_fallthru
          _
        // Predicated region
        $region21: #{tpu_custom_call.1} parent=11 // pred_check
          %p229 = pneg %p117
        $region22: #{tpu_custom_call.1} parent=11 // pred_check_branch
          %231 = sbr.rel (%p229) target = $region24
        $region23: #{tpu_custom_call.1} parent=11 // pred_region
          _
        $region24: #{tpu_custom_call.1} parent=11 // pred_fallthru
          _
        // Predicated region
        $region25: #{tpu_custom_call.1} parent=11 // pred_check
          %p232 = pneg %p138
        $region26: #{tpu_custom_call.1} parent=11 // pred_check_branch
          %234 = sbr.rel (%p232) target = $region28
        $region27: #{tpu_custom_call.1} parent=11 // pred_region
          _
        $region28: #{tpu_custom_call.1} parent=11 // pred_fallthru
          _
        // Predicated region
        $region29: #{tpu_custom_call.1} parent=11 // pred_check
          %p235 = pneg %p159
        $region30: #{tpu_custom_call.1} parent=11 // pred_check_branch
          %237 = sbr.rel (%p235) target = $region32
        $region31: #{tpu_custom_call.1} parent=11 // pred_region
          _
        $region32: #{tpu_custom_call.1} parent=11 // pred_fallthru
          _
        // Predicated region
        $region33: #{tpu_custom_call.1} parent=11 // pred_check
          %p238 = pneg %p180
        $region34: #{tpu_custom_call.1} parent=11 // pred_check_branch
          %240 = sbr.rel (%p238) target = $region36
        $region35: #{tpu_custom_call.1} parent=11 // pred_region
          _
        $region36: #{tpu_custom_call.1} parent=11 // pred_fallthru
          _
      $region12: #{tpu_custom_call.1} parent=5 // pred_fallthru
        _
      %p241 = scmp.lt.s32.totalorder %s16, 8
      // Predicated region
      $region37: #{tpu_custom_call.1} parent=5 // pred_check
        %p242 = pneg %p241
      $region38: #{tpu_custom_call.1} parent=5 // pred_check_branch
        %244 = sbr.rel (%p242) target = $region40
      $region39: #{tpu_custom_call.1} parent=5 // pred_region
        // Predicated region
        $region41: #{tpu_custom_call.1} parent=39 // pred_check
          %p245 = pneg %p48
        $region42: #{tpu_custom_call.1} parent=39 // pred_check_branch
          %247 = sbr.rel (%p245) target = $region44
        $region43: #{tpu_custom_call.1} parent=39 // pred_region
          %p248 = scmp.lt.s32.totalorder %s23, 1
          %s249 = scalar_select %p248, %s23, 1
          %s250 = smul.addr %s249, 66
          %s251 = smul.addr %s250, 4
          %s252 = scalar_lea.vmem %s0, %s251
        $region44: #{tpu_custom_call.1} parent=39 // pred_fallthru
          _
      $region40: #{tpu_custom_call.1} parent=5 // pred_fallthru
        _
      %p253 = scmp.le.s32.totalorder 1, %s16
      %p254 = scmp.lt.s32.totalorder %s16, 9
      %p255 = pnand %p253, %p254
      %p256 = pneg %p255
      // Predicated region
      $region45: #{tpu_custom_call.1} parent=5 // pred_check
        _
      $region46: #{tpu_custom_call.1} parent=5 // pred_check_branch
        %258 = sbr.rel (%p255) target = $region48
      $region47: #{tpu_custom_call.1} parent=5 // pred_region
        %s259 = ssub.s32 %s16, 1
        %p260 = scmp.lt.s32.totalorder %s25, 1
        %s261 = scalar_select %p260, %s25, 1
        %s262 = smul.addr %s261, 66
        %s263 = smul.addr %s262, 4
        %s264 = scalar_lea.vmem %s0, %s263
        %p265 = pneg %p54
        %p266 = pneg %p51
        %p267 = pneg %p75
        %p268 = pneg %p72
        %p269 = pneg %p96
        %p270 = pneg %p93
        %p271 = pneg %p117
        %p272 = pneg %p114
        %p273 = pneg %p138
        %p274 = pneg %p135
        %p275 = pneg %p159
        %p276 = pneg %p156
        %p277 = pneg %p180
        %p278 = pneg %p177
        %p279 = pneg %p208
        %p280 = pneg %p205
        %s281 = sand.u32 %s195, 1
        %s282 = scalar_lea.sflag [#allocation5], %s281
        %s283 = sand.u32 %s195, 1
        %s284 = smul.addr %s283, 64
        %s285 = scalar_lea.vmem [#allocation4], %s284
        %p286 = scmp.lt.s32.totalorder %s25, 1
        %s287 = scalar_select %p286, %s25, 1
        %s288 = smul.addr %s287, 66
        %s289 = smul.addr %s288, 4
        %s290 = scalar_lea.vmem %s0, %s289
        %s291 = smul.u32 4, %s26
        %s293 = smul.u32 %s26, 4
        %v294 = vld [vmem:[%s4] sm:$0x1]
        %v295 = vld [vmem:[%s4 + $0x1] sm:$0x1]
        %v296 = vld [vmem:[%s5] sm:$0x1]
        %v297 = vld [vmem:[%s5 + $0x1] sm:$0x1]
        %v298 = vld [vmem:[%s6] sm:$0x1]
        %v299 = vld [vmem:[%s6 + $0x1] sm:$0x1]
        %s300 = smul.u32 %s293, 3
        %s301 = smul.addr %s300, 4
        %s302 = scalar_lea.vmem %s290, %s301
        %v303 = vld [vmem:[%s302] sm:$0xf]
        %v304 = vld [vmem:[%s302 + $0x4] sm:$0xf]
        %v305 = vld [vmem:[%s302 + $0x8] sm:$0xf]
        %v306 = vld [vmem:[%s302 + $0xc] sm:$0xf]
        %v307 = vld [vmem:[%s302 + $0x10] sm:$0xf]
        %v308 = vld [vmem:[%s302 + $0x14] sm:$0xf]
        %v309 = vld [vmem:[%s302 + $0x18] sm:$0xf]
        %v310 = vld [vmem:[%s302 + $0x1c] sm:$0xf]
        %v311 = vld [vmem:[%s302 + $0x20] sm:$0xf]
        %v312 = vld [vmem:[%s302 + $0x24] sm:$0xf]
        %v313 = vld [vmem:[%s302 + $0x28] sm:$0xf]
        %v314 = vld [vmem:[%s302 + $0x2c] sm:$0xf]
        %v315 = vld [vmem:[%s302 + $0x30] sm:$0xf]
        %v316 = vld [vmem:[%s302 + $0x34] sm:$0xf]
        %v317 = vld [vmem:[%s302 + $0x38] sm:$0xf]
        %v318 = vld [vmem:[%s302 + $0x3c] sm:$0xf]
        %v319 = vld [vmem:[%s302 + $0x40] sm:$0xf]
        %v320 = vld [vmem:[%s302 + $0x44] sm:$0xf]
        %v321 = vld [vmem:[%s302 + $0x48] sm:$0xf]
        %v322 = vld [vmem:[%s302 + $0x4c] sm:$0xf]
        %v323 = vld [vmem:[%s302 + $0x50] sm:$0xf]
        %v324 = vld [vmem:[%s302 + $0x54] sm:$0xf]
        %v325 = vld [vmem:[%s302 + $0x58] sm:$0xf]
        %v326 = vld [vmem:[%s302 + $0x5c] sm:$0xf]
        %v327 = vld [vmem:[%s302 + $0x60] sm:$0xf]
        %v328 = vld [vmem:[%s302 + $0x64] sm:$0xf]
        %v329 = vld [vmem:[%s302 + $0x68] sm:$0xf]
        %v330 = vld [vmem:[%s302 + $0x6c] sm:$0xf]
        %v331 = vld [vmem:[%s302 + $0x70] sm:$0xf]
        %v332 = vld [vmem:[%s302 + $0x74] sm:$0xf]
        %v349 = vunpack.c.l.b16 %v303
        %v350 = vunpack.c.l.b16 %v304
        %v351 = vunpack.c.l.b16 %v306
        %v352 = vunpack.c.l.b16 %v307
        %v353 = vunpack.c.l.b16 %v309
        %v354 = vunpack.c.l.b16 %v310
        %v355 = vunpack.c.l.b16 %v312
        %v356 = vunpack.c.l.b16 %v313
        %v357 = vunpack.c.l.b16 %v315
        %v358 = vunpack.c.l.b16 %v316
        %v359 = vunpack.c.l.b16 %v318
        %v360 = vunpack.c.l.b16 %v319
        %v361 = vunpack.c.l.b16 %v321
        %v362 = vunpack.c.l.b16 %v322
        %v363 = vunpack.c.l.b16 %v324
        %v364 = vunpack.c.l.b16 %v325
        %v365 = vpack.c.b16 %v350, %v349
        %v366 = vpack.c.b16 %v352, %v351
        %v367 = vpack.c.b16 %v354, %v353
        %v368 = vpack.c.b16 %v356, %v355
        %v369 = vpack.c.b16 %v358, %v357
        %v370 = vpack.c.b16 %v360, %v359
        %v371 = vpack.c.b16 %v362, %v361
        %v372 = vpack.c.b16 %v364, %v363
        %v381 = vunpack.c.l.b16 %v305
        %v382 = vunpack.c.l.b16 %v308
        %v383 = vunpack.c.l.b16 %v311
        %v384 = vunpack.c.l.b16 %v314
        %v385 = vunpack.c.l.b16 %v317
        %v386 = vunpack.c.l.b16 %v320
        %v387 = vunpack.c.l.b16 %v323
        %v388 = vunpack.c.l.b16 %v326
        %v389 = vpack.c.b16 %v381, %v381
        %v390 = vpack.c.b16 %v382, %v382
        %v391 = vpack.c.b16 %v383, %v383
        %v392 = vpack.c.b16 %v384, %v384
        %v393 = vpack.c.b16 %v385, %v385
        %v394 = vpack.c.b16 %v386, %v386
        %v395 = vpack.c.b16 %v387, %v387
        %v396 = vpack.c.b16 %v388, %v388
        %vm397 = vsmask.f32 7424
        %v399 = vshrl.u32 %v365, 16
        %v401 = vshll.u32 %v365, 16
        %v403 = vrot.slane %v401, 1
        %v404 = vor.u32 %v399, %v403
        %v406 = vshll.u32 %v389, 16
        %v408 = vrot.slane %v406, 1
        %v409 = vsel %vm397, %v404, %v408
        %v411 = vshrl.u32 %v366, 16
        %v413 = vshll.u32 %v366, 16
        %v415 = vrot.slane %v413, 1
        %v416 = vor.u32 %v411, %v415
        %v418 = vshll.u32 %v390, 16
        %v420 = vrot.slane %v418, 1
        %v421 = vsel %vm397, %v416, %v420
        %v423 = vshrl.u32 %v367, 16
        %v425 = vshll.u32 %v367, 16
        %v427 = vrot.slane %v425, 1
        %v428 = vor.u32 %v423, %v427
        %v430 = vshll.u32 %v391, 16
        %v432 = vrot.slane %v430, 1
        %v433 = vsel %vm397, %v428, %v432
        %v435 = vshrl.u32 %v368, 16
        %v437 = vshll.u32 %v368, 16
        %v439 = vrot.slane %v437, 1
        %v440 = vor.u32 %v435, %v439
        %v442 = vshll.u32 %v392, 16
        %v444 = vrot.slane %v442, 1
        %v445 = vsel %vm397, %v440, %v444
        %v447 = vshrl.u32 %v369, 16
        %v449 = vshll.u32 %v369, 16
        %v451 = vrot.slane %v449, 1
        %v452 = vor.u32 %v447, %v451
        %v454 = vshll.u32 %v393, 16
        %v456 = vrot.slane %v454, 1
        %v457 = vsel %vm397, %v452, %v456
        %v459 = vshrl.u32 %v370, 16
        %v461 = vshll.u32 %v370, 16
        %v463 = vrot.slane %v461, 1
        %v464 = vor.u32 %v459, %v463
        %v466 = vshll.u32 %v394, 16
        %v468 = vrot.slane %v466, 1
        %v469 = vsel %vm397, %v464, %v468
        %v471 = vshrl.u32 %v371, 16
        %v473 = vshll.u32 %v371, 16
        %v475 = vrot.slane %v473, 1
        %v476 = vor.u32 %v471, %v475
        %v478 = vshll.u32 %v395, 16
        %v480 = vrot.slane %v478, 1
        %v481 = vsel %vm397, %v476, %v480
        %v483 = vshrl.u32 %v372, 16
        %v485 = vshll.u32 %v372, 16
        %v487 = vrot.slane %v485, 1
        %v488 = vor.u32 %v483, %v487
        %v490 = vshll.u32 %v396, 16
        %v492 = vrot.slane %v490, 1
        %v493 = vsel %vm397, %v488, %v492
        %494 = vrot.lane.b32.xlu0 %v409, 4
        %v495 = vpop.permute.xlu0 %494
        %496 = vrot.lane.b32.xlu0 %v421, 4
        %v497 = vpop.permute.xlu0 %496
        %498 = vrot.lane.b32.xlu0 %v433, 4
        %v499 = vpop.permute.xlu0 %498
        %500 = vrot.lane.b32.xlu0 %v445, 4
        %v501 = vpop.permute.xlu0 %500
        %502 = vrot.lane.b32.xlu0 %v457, 4
        %v503 = vpop.permute.xlu0 %502
        %504 = vrot.lane.b32.xlu0 %v469, 4
        %v505 = vpop.permute.xlu0 %504
        %506 = vrot.lane.b32.xlu0 %v481, 4
        %v507 = vpop.permute.xlu0 %506
        %508 = vrot.lane.b32.xlu0 %v493, 4
        %v509 = vpop.permute.xlu0 %508
        %vm510 = vcmask 1046528
        %v511 = vrot.slane %v365, 1
        %v512 = vrot.slane %v389, 1
        %v513 = vsel %vm510, %v511, %v512
        %v514 = vrot.slane %v366, 1
        %v515 = vrot.slane %v390, 1
        %v516 = vsel %vm510, %v514, %v515
        %v517 = vrot.slane %v367, 1
        %v518 = vrot.slane %v391, 1
        %v519 = vsel %vm510, %v517, %v518
        %v520 = vrot.slane %v368, 1
        %v521 = vrot.slane %v392, 1
        %v522 = vsel %vm510, %v520, %v521
        %v523 = vrot.slane %v369, 1
        %v524 = vrot.slane %v393, 1
        %v525 = vsel %vm510, %v523, %v524
        %v526 = vrot.slane %v370, 1
        %v527 = vrot.slane %v394, 1
        %v528 = vsel %vm510, %v526, %v527
        %v529 = vrot.slane %v371, 1
        %v530 = vrot.slane %v395, 1
        %v531 = vsel %vm510, %v529, %v530
        %v532 = vrot.slane %v372, 1
        %v533 = vrot.slane %v396, 1
        %v534 = vsel %vm510, %v532, %v533
        %535 = vrot.lane.b32.xlu0 %v513, 8
        %v536 = vpop.permute.xlu0 %535
        %537 = vrot.lane.b32.xlu0 %v516, 8
        %v538 = vpop.permute.xlu0 %537
        %539 = vrot.lane.b32.xlu0 %v519, 8
        %v540 = vpop.permute.xlu0 %539
        %541 = vrot.lane.b32.xlu0 %v522, 8
        %v542 = vpop.permute.xlu0 %541
        %543 = vrot.lane.b32.xlu0 %v525, 8
        %v544 = vpop.permute.xlu0 %543
        %545 = vrot.lane.b32.xlu0 %v528, 8
        %v546 = vpop.permute.xlu0 %545
        %547 = vrot.lane.b32.xlu0 %v531, 8
        %v548 = vpop.permute.xlu0 %547
        %549 = vrot.lane.b32.xlu0 %v534, 8
        %v550 = vpop.permute.xlu0 %549
        %v553 = vunpack.c.l.b16 %v327
        %v554 = vunpack.c.l.b16 %v328
        %v555 = vpack.c.b16 %v554, %v553
        %556 = vrot.lane.b32.xlu0 %v366, 12
        %v557 = vpop.permute.xlu0 %556
        %558 = vrot.lane.b32.xlu0 %v367, 12
        %v559 = vpop.permute.xlu0 %558
        %560 = vrot.lane.b32.xlu0 %v368, 12
        %v561 = vpop.permute.xlu0 %560
        %562 = vrot.lane.b32.xlu0 %v369, 12
        %v563 = vpop.permute.xlu0 %562
        %564 = vrot.lane.b32.xlu0 %v370, 12
        %v565 = vpop.permute.xlu0 %564
        %566 = vrot.lane.b32.xlu0 %v371, 12
        %v567 = vpop.permute.xlu0 %566
        %568 = vrot.lane.b32.xlu0 %v372, 12
        %v569 = vpop.permute.xlu0 %568
        %570 = vrot.lane.b32.xlu0 %v555, 12
        %v571 = vpop.permute.xlu0 %570
        %v573 = vunpack.c.l.b16 %v329
        %v574 = vpack.c.b16 %v573, %v573
        %v576 = vshrl.u32 %v555, 16
        %v578 = vshll.u32 %v555, 16
        %v580 = vrot.slane %v578, 1
        %v581 = vor.u32 %v576, %v580
        %v583 = vshll.u32 %v574, 16
        %v585 = vrot.slane %v583, 1
        %v586 = vsel %vm397, %v581, %v585
        %587 = vrot.lane.b32.xlu0 %v421, 16
        %v588 = vpop.permute.xlu0 %587
        %589 = vrot.lane.b32.xlu0 %v433, 16
        %v590 = vpop.permute.xlu0 %589
        %591 = vrot.lane.b32.xlu0 %v445, 16
        %v592 = vpop.permute.xlu0 %591
        %593 = vrot.lane.b32.xlu0 %v457, 16
        %v594 = vpop.permute.xlu0 %593
        %595 = vrot.lane.b32.xlu0 %v469, 16
        %v596 = vpop.permute.xlu0 %595
        %597 = vrot.lane.b32.xlu0 %v481, 16
        %v598 = vpop.permute.xlu0 %597
        %599 = vrot.lane.b32.xlu0 %v493, 16
        %v600 = vpop.permute.xlu0 %599
        %601 = vrot.lane.b32.xlu0 %v586, 16
        %v602 = vpop.permute.xlu0 %601
        %v603 = vrot.slane %v555, 1
        %v604 = vrot.slane %v574, 1
        %v605 = vsel %vm510, %v603, %v604
        %606 = vrot.lane.b32.xlu0 %v516, 20
        %v607 = vpop.permute.xlu0 %606
        %608 = vrot.lane.b32.xlu0 %v519, 20
        %v609 = vpop.permute.xlu0 %608
        %610 = vrot.lane.b32.xlu0 %v522, 20
        %v611 = vpop.permute.xlu0 %610
        %612 = vrot.lane.b32.xlu0 %v525, 20
        %v613 = vpop.permute.xlu0 %612
        %614 = vrot.lane.b32.xlu0 %v528, 20
        %v615 = vpop.permute.xlu0 %614
        %616 = vrot.lane.b32.xlu0 %v531, 20
        %v617 = vpop.permute.xlu0 %616
        %618 = vrot.lane.b32.xlu0 %v534, 20
        %v619 = vpop.permute.xlu0 %618
        %620 = vrot.lane.b32.xlu0 %v605, 20
        %v621 = vpop.permute.xlu0 %620
        %v624 = vunpack.c.l.b16 %v330
        %v625 = vunpack.c.l.b16 %v331
        %v626 = vpack.c.b16 %v625, %v624
        %627 = vrot.lane.b32.xlu0 %v367, 24
        %v628 = vpop.permute.xlu0 %627
        %629 = vrot.lane.b32.xlu0 %v368, 24
        %v630 = vpop.permute.xlu0 %629
        %631 = vrot.lane.b32.xlu0 %v369, 24
        %v632 = vpop.permute.xlu0 %631
        %633 = vrot.lane.b32.xlu0 %v370, 24
        %v634 = vpop.permute.xlu0 %633
        %635 = vrot.lane.b32.xlu0 %v371, 24
        %v636 = vpop.permute.xlu0 %635
        %637 = vrot.lane.b32.xlu0 %v372, 24
        %v638 = vpop.permute.xlu0 %637
        %639 = vrot.lane.b32.xlu0 %v555, 24
        %v640 = vpop.permute.xlu0 %639
        %641 = vrot.lane.b32.xlu0 %v626, 24
        %v642 = vpop.permute.xlu0 %641
        %v644 = vunpack.c.l.b16 %v332
        %v645 = vpack.c.b16 %v644, %v644
        %v647 = vshrl.u32 %v626, 16
        %v649 = vshll.u32 %v626, 16
        %v651 = vrot.slane %v649, 1
        %v652 = vor.u32 %v647, %v651
        %v654 = vshll.u32 %v645, 16
        %v656 = vrot.slane %v654, 1
        %v657 = vsel %vm397, %v652, %v656
        %658 = vrot.lane.b32.xlu0 %v433, 28
        %v659 = vpop.permute.xlu0 %658
        %660 = vrot.lane.b32.xlu0 %v445, 28
        %v661 = vpop.permute.xlu0 %660
        %662 = vrot.lane.b32.xlu0 %v457, 28
        %v663 = vpop.permute.xlu0 %662
        %664 = vrot.lane.b32.xlu0 %v469, 28
        %v665 = vpop.permute.xlu0 %664
        %666 = vrot.lane.b32.xlu0 %v481, 28
        %v667 = vpop.permute.xlu0 %666
        %668 = vrot.lane.b32.xlu0 %v493, 28
        %v669 = vpop.permute.xlu0 %668
        %670 = vrot.lane.b32.xlu0 %v586, 28
        %v671 = vpop.permute.xlu0 %670
        %672 = vrot.lane.b32.xlu0 %v657, 28
        %v673 = vpop.permute.xlu0 %672
        %v674 = vrot.slane %v626, 1
        %v675 = vrot.slane %v645, 1
        %v676 = vsel %vm510, %v674, %v675
        %677 = vrot.lane.b32.xlu0 %v519, 32
        %v678 = vpop.permute.xlu0 %677
        %679 = vrot.lane.b32.xlu0 %v522, 32
        %v680 = vpop.permute.xlu0 %679
        %681 = vrot.lane.b32.xlu0 %v525, 32
        %v682 = vpop.permute.xlu0 %681
        %683 = vrot.lane.b32.xlu0 %v528, 32
        %v684 = vpop.permute.xlu0 %683
        %685 = vrot.lane.b32.xlu0 %v531, 32
        %v686 = vpop.permute.xlu0 %685
        %687 = vrot.lane.b32.xlu0 %v534, 32
        %v688 = vpop.permute.xlu0 %687
        %689 = vrot.lane.b32.xlu0 %v605, 32
        %v690 = vpop.permute.xlu0 %689
        %691 = vrot.lane.b32.xlu0 %v676, 32
        %v692 = vpop.permute.xlu0 %691
        %vm693 = vcmask 31744
        %v695 = vsel %vm693, %v365, %v495
        %v697 = vsel %vm693, %v366, %v497
        %v699 = vsel %vm693, %v367, %v499
        %v701 = vsel %vm693, %v368, %v501
        %v703 = vsel %vm693, %v369, %v503
        %v705 = vsel %vm693, %v370, %v505
        %v707 = vsel %vm693, %v371, %v507
        %v709 = vsel %vm693, %v372, %v509
        %vm710 = vcmask 64512
        %v712 = vsel %vm710, %v695, %v536
        %v714 = vsel %vm710, %v697, %v538
        %v716 = vsel %vm710, %v699, %v540
        %v718 = vsel %vm710, %v701, %v542
        %v720 = vsel %vm710, %v703, %v544
        %v722 = vsel %vm710, %v705, %v546
        %v724 = vsel %vm710, %v707, %v548
        %v726 = vsel %vm710, %v709, %v550
        %vm727 = vcmask 97280
        %v729 = vsel %vm727, %v712, %v557
        %v731 = vsel %vm727, %v714, %v559
        %v733 = vsel %vm727, %v716, %v561
        %v735 = vsel %vm727, %v718, %v563
        %v737 = vsel %vm727, %v720, %v565
        %v739 = vsel %vm727, %v722, %v567
        %v741 = vsel %vm727, %v724, %v569
        %v743 = vsel %vm727, %v726, %v571
        %vm744 = vcmask 130048
        %v746 = vsel %vm744, %v729, %v588
        %v748 = vsel %vm744, %v731, %v590
        %v750 = vsel %vm744, %v733, %v592
        %v752 = vsel %vm744, %v735, %v594
        %v754 = vsel %vm744, %v737, %v596
        %v756 = vsel %vm744, %v739, %v598
        %v758 = vsel %vm744, %v741, %v600
        %v760 = vsel %vm744, %v743, %v602
        %vm761 = vcmask 162816
        %v763 = vsel %vm761, %v746, %v607
        %v765 = vsel %vm761, %v748, %v609
        %v767 = vsel %vm761, %v750, %v611
        %v769 = vsel %vm761, %v752, %v613
        %v771 = vsel %vm761, %v754, %v615
        %v773 = vsel %vm761, %v756, %v617
        %v775 = vsel %vm761, %v758, %v619
        %v777 = vsel %vm761, %v760, %v621
        %vm778 = vcmask 195584
        %v780 = vsel %vm778, %v763, %v628
        %v782 = vsel %vm778, %v765, %v630
        %v784 = vsel %vm778, %v767, %v632
        %v786 = vsel %vm778, %v769, %v634
        %v788 = vsel %vm778, %v771, %v636
        %v790 = vsel %vm778, %v773, %v638
        %v792 = vsel %vm778, %v775, %v640
        %v794 = vsel %vm778, %v777, %v642
        %vm795 = vcmask 228352
        %v797 = vsel %vm795, %v780, %v659
        %v799 = vsel %vm795, %v782, %v661
        %v801 = vsel %vm795, %v784, %v663
        %v803 = vsel %vm795, %v786, %v665
        %v805 = vsel %vm795, %v788, %v667
        %v807 = vsel %vm795, %v790, %v669
        %v809 = vsel %vm795, %v792, %v671
        %v811 = vsel %vm795, %v794, %v673
        %vm812 = vcmask 261120
        %v814 = vsel %vm812, %v797, %v678
        %v816 = vsel %vm812, %v799, %v680
        %v818 = vsel %vm812, %v801, %v682
        %v820 = vsel %vm812, %v803, %v684
        %v822 = vsel %vm812, %v805, %v686
        %v824 = vsel %vm812, %v807, %v688
        %v826 = vsel %vm812, %v809, %v690
        %v828 = vsel %vm812, %v811, %v692
        %v829 = vld [vmem:[%s1] sm:$0xf]
        %v830 = vld [vmem:[%s1 + $0x4] sm:$0xf]
        %v831 = vld [vmem:[%s1 + $0x8] sm:$0xf]
        %v832 = vld [vmem:[%s1 + $0xc] sm:$0xf]
        %v833 = vld [vmem:[%s1 + $0x10] sm:$0x3]
        %v839 = vunpack.c.l.b16 %v829
        %v840 = vunpack.c.l.b16 %v830
        %v841 = vunpack.c.l.b16 %v831
        %v842 = vunpack.c.l.b16 %v832
        %v843 = vunpack.c.l.b16 %v833
        %v844 = vpack.c.b16 %v840, %v839
        %v845 = vpack.c.b16 %v842, %v841
        %v846 = vpack.c.b16 %v843, %v843
        %vm849 = vcmask 293888
        %v850 = vsel %vm849, %v814, 0
        %v852 = vsel %vm849, %v816, 0
        %v854 = vsel %vm849, %v818, 0
        %v856 = vsel %vm849, %v820, 0
        %v858 = vsel %vm849, %v822, 0
        %v860 = vsel %vm849, %v824, 0
        %v862 = vsel %vm849, %v826, 0
        %v864 = vsel %vm849, %v828, 0
        %vm866 = vcmask 1041408
        %v868 = vsel %vm866, %v846, 0
        %870 = vmatprep.subr.bf16.mxu0 0
        %871 = vmatpush1.bf16.msra.mxu0 %v844
        %872 = vmatprep.subr.bf16.mxu0 0
        %873 = vmatpush1.bf16.msra.mxu0 %v845
        %874 = vmatprep.subr.bf16.mxu0 0
        %875 = vmatpush1.bf16.msra.mxu0 %v868
        %876 = vmatprep.subr.bf16.mxu0 0
        %877 = vmatpush1.bf16.msra.mxu0 0
        %878 = vmatprep.subr.bf16.mxu0 0
        %879 = vmatpush1.bf16.msra.mxu0 0
        %880 = vmatprep.subr.bf16.mxu0 0
        %881 = vmatpush1.bf16.msra.mxu0 0
        %882 = vmatprep.subr.bf16.mxu0 0
        %883 = vmatpush1.bf16.msra.mxu0 0
        %884 = vmatprep.subr.bf16.mxu0 0
        %885 = vmatpush1.bf16.msra.mxu0 0
        %886 = vmatprep.subr.bf16.mxu0 0
        %887 = vmatpush1.bf16.msra.mxu0 0
        %888 = vmatprep.subr.bf16.mxu0 0
        %889 = vmatpush1.bf16.msra.mxu0 0
        %890 = vmatprep.subr.bf16.mxu0 0
        %891 = vmatpush1.bf16.msra.mxu0 0
        %892 = vmatprep.subr.bf16.mxu0 0
        %893 = vmatpush1.bf16.msra.mxu0 0
        %894 = vmatprep.subr.bf16.mxu0 0
        %895 = vmatpush1.bf16.msra.mxu0 0
        %896 = vmatprep.subr.bf16.mxu0 0
        %897 = vmatpush1.bf16.msra.mxu0 0
        %898 = vmatprep.subr.bf16.mxu0 0
        %899 = vmatpush1.bf16.msra.mxu0 0
        %900 = vmatprep.subr.bf16.mxu0 0
        %901 = vmatpush1.bf16.msra.mxu0 0
        %902 = vmatprep.mubr.bf16.mxu0 0
        %903 = vmatmul.mubr.bf16.gmra.mrb[0].mxu0 %v850
        %v904 = vpop.f32.mrb[0].mxu0
        %v905 = vadd.f32 0.0, %v904
        %v906 = vpop.f32.mrb[0].mxu0
        %v907 = vpop.f32.mrb[0].mxu0
        %v908 = vadd.f32 0.0, %v907
        %v909 = vpop.f32.mrb[0].mxu0
        %910 = vmatprep.mubr.bf16.mxu0 0
        %911 = vmatmul.mubr.bf16.gmra.mrb[0].mxu0 %v852
        %v912 = vpop.f32.mrb[0].mxu0
        %v913 = vadd.f32 0.0, %v912
        %v914 = vpop.f32.mrb[0].mxu0
        %v915 = vpop.f32.mrb[0].mxu0
        %v916 = vadd.f32 0.0, %v915
        %v917 = vpop.f32.mrb[0].mxu0
        %918 = vmatprep.mubr.bf16.mxu0 0
        %919 = vmatmul.mubr.bf16.gmra.mrb[0].mxu0 %v854
        %v920 = vpop.f32.mrb[0].mxu0
        %v921 = vadd.f32 0.0, %v920
        %v922 = vpop.f32.mrb[0].mxu0
        %v923 = vpop.f32.mrb[0].mxu0
        %v924 = vadd.f32 0.0, %v923
        %v925 = vpop.f32.mrb[0].mxu0
        %926 = vmatprep.mubr.bf16.mxu0 0
        %927 = vmatmul.mubr.bf16.gmra.mrb[0].mxu0 %v856
        %v928 = vpop.f32.mrb[0].mxu0
        %v929 = vadd.f32 0.0, %v928
        %v930 = vpop.f32.mrb[0].mxu0
        %v931 = vpop.f32.mrb[0].mxu0
        %v932 = vadd.f32 0.0, %v931
        %v933 = vpop.f32.mrb[0].mxu0
        %934 = vmatprep.mubr.bf16.mxu0 0
        %935 = vmatmul.mubr.bf16.gmra.mrb[0].mxu0 %v858
        %v936 = vpop.f32.mrb[0].mxu0
        %v937 = vadd.f32 0.0, %v936
        %v938 = vpop.f32.mrb[0].mxu0
        %v939 = vpop.f32.mrb[0].mxu0
        %v940 = vadd.f32 0.0, %v939
        %v941 = vpop.f32.mrb[0].mxu0
        %942 = vmatprep.mubr.bf16.mxu0 0
        %943 = vmatmul.mubr.bf16.gmra.mrb[0].mxu0 %v860
        %v944 = vpop.f32.mrb[0].mxu0
        %v945 = vadd.f32 0.0, %v944
        %v946 = vpop.f32.mrb[0].mxu0
        %v947 = vpop.f32.mrb[0].mxu0
        %v948 = vadd.f32 0.0, %v947
        %v949 = vpop.f32.mrb[0].mxu0
        %950 = vmatprep.mubr.bf16.mxu0 0
        %951 = vmatmul.mubr.bf16.gmra.mrb[0].mxu0 %v862
        %v952 = vpop.f32.mrb[0].mxu0
        %v953 = vadd.f32 0.0, %v952
        %v954 = vpop.f32.mrb[0].mxu0
        %v955 = vpop.f32.mrb[0].mxu0
        %v956 = vadd.f32 0.0, %v955
        %v957 = vpop.f32.mrb[0].mxu0
        %958 = vmatprep.mubr.bf16.mxu0 0
        %959 = vmatmul.mubr.bf16.gmra.mrb[0].mxu0 %v864
        %v960 = vpop.f32.mrb[0].mxu0
        %v961 = vadd.f32 0.0, %v960
        %v962 = vpop.f32.mrb[0].mxu0
        %v963 = vpop.f32.mrb[0].mxu0
        %v964 = vadd.f32 0.0, %v963
        %v965 = vpop.f32.mrb[0].mxu0
        %966 = vdwg.mxu0
        %v967 = vlaneseq
        %v968 = vshrl.u32 %v967, 7
        %v969 = vsub.s32 0, %v968
        %v970 = vrot.slane %v294, %v969
        %v971 = vadd.f32 %v905, %v970
        %v972 = vadd.f32 %v908, %v970
        %v973 = vadd.f32 %v913, %v970
        %v974 = vadd.f32 %v916, %v970
        %v975 = vadd.f32 %v921, %v970
        %v976 = vadd.f32 %v924, %v970
        %v977 = vadd.f32 %v929, %v970
        %v978 = vadd.f32 %v932, %v970
        %v979 = vadd.f32 %v937, %v970
        %v980 = vadd.f32 %v940, %v970
        %v981 = vadd.f32 %v945, %v970
        %v982 = vadd.f32 %v948, %v970
        %v983 = vadd.f32 %v953, %v970
        %v984 = vadd.f32 %v956, %v970
        %v985 = vadd.f32 %v961, %v970
        %v986 = vadd.f32 %v964, %v970
        %vm987 = vcmp.ge.f32.partialorder %v971, 0.0
        %vm988 = vcmp.ge.f32.partialorder %v972, 0.0
        %vm989 = vcmp.ge.f32.partialorder %v973, 0.0
        %vm990 = vcmp.ge.f32.partialorder %v974, 0.0
        %vm991 = vcmp.ge.f32.partialorder %v975, 0.0
        %vm992 = vcmp.ge.f32.partialorder %v976, 0.0
        %vm993 = vcmp.ge.f32.partialorder %v977, 0.0
        %vm994 = vcmp.ge.f32.partialorder %v978, 0.0
        %vm995 = vcmp.ge.f32.partialorder %v979, 0.0
        %vm996 = vcmp.ge.f32.partialorder %v980, 0.0
        %vm997 = vcmp.ge.f32.partialorder %v981, 0.0
        %vm998 = vcmp.ge.f32.partialorder %v982, 0.0
        %vm999 = vcmp.ge.f32.partialorder %v983, 0.0
        %vm1000 = vcmp.ge.f32.partialorder %v984, 0.0
        %vm1001 = vcmp.ge.f32.partialorder %v985, 0.0
        %vm1002 = vcmp.ge.f32.partialorder %v986, 0.0
        %v1003 = vlaneseq
        %v1004 = vshrl.u32 %v1003, 7
        %v1005 = vsub.s32 0, %v1004
        %v1006 = vrot.slane %v295, %v1005
        %v1007 = vmul.f32 %v971, %v1006
        %v1008 = vmul.f32 %v972, %v1006
        %v1009 = vmul.f32 %v973, %v1006
        %v1010 = vmul.f32 %v974, %v1006
        %v1011 = vmul.f32 %v975, %v1006
        %v1012 = vmul.f32 %v976, %v1006
        %v1013 = vmul.f32 %v977, %v1006
        %v1014 = vmul.f32 %v978, %v1006
        %v1015 = vmul.f32 %v979, %v1006
        %v1016 = vmul.f32 %v980, %v1006
        %v1017 = vmul.f32 %v981, %v1006
        %v1018 = vmul.f32 %v982, %v1006
        %v1019 = vmul.f32 %v983, %v1006
        %v1020 = vmul.f32 %v984, %v1006
        %v1021 = vmul.f32 %v985, %v1006
        %v1022 = vmul.f32 %v986, %v1006
        %v1023 = vsel %vm987, %v971, %v1007
        %v1024 = vsel %vm988, %v972, %v1008
        %v1025 = vsel %vm989, %v973, %v1009
        %v1026 = vsel %vm990, %v974, %v1010
        %v1027 = vsel %vm991, %v975, %v1011
        %v1028 = vsel %vm992, %v976, %v1012
        %v1029 = vsel %vm993, %v977, %v1013
        %v1030 = vsel %vm994, %v978, %v1014
        %v1031 = vsel %vm995, %v979, %v1015
        %v1032 = vsel %vm996, %v980, %v1016
        %v1033 = vsel %vm997, %v981, %v1017
        %v1034 = vsel %vm998, %v982, %v1018
        %v1035 = vsel %vm999, %v983, %v1019
        %v1036 = vsel %vm1000, %v984, %v1020
        %v1037 = vsel %vm1001, %v985, %v1021
        %v1038 = vsel %vm1002, %v986, %v1022
        %vm1039 = vcmask 523264
        %1040 = vst.msk [vmem:[%s285] sm:$0xff] %vm1039, %v1027
        %1041 = vst.msk [vmem:[%s285 + $0x8] sm:$0xff] %vm1039, %v1028
        %1042 = vst.msk [vmem:[%s285 + $0x10] sm:$0xff] %vm1039, %v1029
        %1043 = vst.msk [vmem:[%s285 + $0x18] sm:$0xff] %vm1039, %v1030
        %1044 = vst.msk [vmem:[%s285 + $0x20] sm:$0xff] %vm1039, %v1031
        %1045 = vst.msk [vmem:[%s285 + $0x28] sm:$0xff] %vm1039, %v1032
        %1046 = vst.msk [vmem:[%s285 + $0x30] sm:$0xff] %vm1039, %v1033
        %1047 = vst.msk [vmem:[%s285 + $0x38] sm:$0xff] %vm1039, %v1034
        %v1048 = vpack.c.bf16 %v1024, %v1023
        %v1049 = vpack.c.bf16 %v1026, %v1025
        %v1050 = vpack.c.bf16 %v1028, %v1027
        %v1051 = vpack.c.bf16 %v1030, %v1029
        %v1052 = vpack.c.bf16 %v1032, %v1031
        %v1053 = vpack.c.bf16 %v1034, %v1033
        %v1054 = vpack.c.bf16 %v1036, %v1035
        %v1055 = vpack.c.bf16 %v1038, %v1037
        %v1064 = vunpack.c.l.b16 %v1048
        %v1065 = vunpack.c.h.b16 %v1048
        %v1066 = vunpack.c.l.b16 %v1049
        %v1067 = vunpack.c.h.b16 %v1049
        %v1068 = vunpack.c.l.b16 %v1050
        %v1069 = vunpack.c.h.b16 %v1050
        %v1070 = vunpack.c.l.b16 %v1051
        %v1071 = vunpack.c.h.b16 %v1051
        %v1072 = vunpack.c.l.b16 %v1052
        %v1073 = vunpack.c.h.b16 %v1052
        %v1074 = vunpack.c.l.b16 %v1053
        %v1075 = vunpack.c.h.b16 %v1053
        %v1076 = vunpack.c.l.b16 %v1054
        %v1077 = vunpack.c.h.b16 %v1054
        %v1078 = vunpack.c.l.b16 %v1055
        %v1079 = vunpack.c.h.b16 %v1055
        %v1080 = vpack.c.b16 %v1064, %v1064
        %v1081 = vpack.c.b16 %v1065, %v1065
        %v1082 = vpack.c.b16 %v1066, %v1066
        %v1083 = vpack.c.b16 %v1067, %v1067
        %v1084 = vpack.c.b16 %v1068, %v1068
        %v1085 = vpack.c.b16 %v1069, %v1069
        %v1086 = vpack.c.b16 %v1070, %v1070
        %v1087 = vpack.c.b16 %v1071, %v1071
        %v1088 = vpack.c.b16 %v1072, %v1072
        %v1089 = vpack.c.b16 %v1073, %v1073
        %v1090 = vpack.c.b16 %v1074, %v1074
        %v1091 = vpack.c.b16 %v1075, %v1075
        %v1092 = vpack.c.b16 %v1076, %v1076
        %v1093 = vpack.c.b16 %v1077, %v1077
        %v1094 = vpack.c.b16 %v1078, %v1078
        %v1095 = vpack.c.b16 %v1079, %v1079
        %vm1096 = vsmask.f32 256
        %vm1097 = vsmask.f32 4368
        %vm1098 = vmor %vm1096, %vm1097
        %v1100 = vshrl.u32 %v1080, 16
        %v1102 = vrot.slane %v1100, 7
        %v1103 = vshll.u32 %v1080, 16
        %v1105 = vor.u32 %v1102, %v1103
        %v1106 = vrot.slane %v1102, 4
        %v1108 = vshrl.u32 %v1081, 16
        %v1110 = vrot.slane %v1108, 7
        %v1111 = vshll.u32 %v1081, 16
        %v1113 = vor.u32 %v1110, %v1111
        %v1114 = vsel %vm1098, %v1106, %v1113
        %v1115 = vrot.slane %v1110, 4
        %v1117 = vshrl.u32 %v1082, 16
        %v1119 = vrot.slane %v1117, 7
        %v1120 = vshll.u32 %v1082, 16
        %v1122 = vor.u32 %v1119, %v1120
        %v1123 = vrot.slane %v1119, 4
        %v1125 = vshrl.u32 %v1083, 16
        %v1127 = vrot.slane %v1125, 7
        %v1128 = vshll.u32 %v1083, 16
        %v1130 = vor.u32 %v1127, %v1128
        %v1131 = vsel %vm1098, %v1123, %v1130
        %v1132 = vrot.slane %v1127, 4
        %v1134 = vshrl.u32 %v1084, 16
        %v1136 = vrot.slane %v1134, 7
        %v1137 = vshll.u32 %v1084, 16
        %v1139 = vor.u32 %v1136, %v1137
        %v1140 = vrot.slane %v1136, 4
        %v1142 = vshrl.u32 %v1085, 16
        %v1144 = vrot.slane %v1142, 7
        %v1145 = vshll.u32 %v1085, 16
        %v1147 = vor.u32 %v1144, %v1145
        %v1148 = vsel %vm1098, %v1140, %v1147
        %v1149 = vrot.slane %v1144, 4
        %v1151 = vshrl.u32 %v1086, 16
        %v1153 = vrot.slane %v1151, 7
        %v1154 = vshll.u32 %v1086, 16
        %v1156 = vor.u32 %v1153, %v1154
        %v1157 = vrot.slane %v1153, 4
        %v1159 = vshrl.u32 %v1087, 16
        %v1161 = vrot.slane %v1159, 7
        %v1162 = vshll.u32 %v1087, 16
        %v1164 = vor.u32 %v1161, %v1162
        %v1165 = vsel %vm1098, %v1157, %v1164
        %v1166 = vrot.slane %v1161, 4
        %v1168 = vshrl.u32 %v1088, 16
        %v1170 = vrot.slane %v1168, 7
        %v1171 = vshll.u32 %v1088, 16
        %v1173 = vor.u32 %v1170, %v1171
        %v1174 = vrot.slane %v1170, 4
        %v1176 = vshrl.u32 %v1089, 16
        %v1178 = vrot.slane %v1176, 7
        %v1179 = vshll.u32 %v1089, 16
        %v1181 = vor.u32 %v1178, %v1179
        %v1182 = vsel %vm1098, %v1174, %v1181
        %v1183 = vrot.slane %v1178, 4
        %v1185 = vshrl.u32 %v1090, 16
        %v1187 = vrot.slane %v1185, 7
        %v1188 = vshll.u32 %v1090, 16
        %v1190 = vor.u32 %v1187, %v1188
        %v1191 = vrot.slane %v1187, 4
        %v1193 = vshrl.u32 %v1091, 16
        %v1195 = vrot.slane %v1193, 7
        %v1196 = vshll.u32 %v1091, 16
        %v1198 = vor.u32 %v1195, %v1196
        %v1199 = vsel %vm1098, %v1191, %v1198
        %v1200 = vrot.slane %v1195, 4
        %v1202 = vshrl.u32 %v1092, 16
        %v1204 = vrot.slane %v1202, 7
        %v1205 = vshll.u32 %v1092, 16
        %v1207 = vor.u32 %v1204, %v1205
        %v1208 = vrot.slane %v1204, 4
        %v1210 = vshrl.u32 %v1093, 16
        %v1212 = vrot.slane %v1210, 7
        %v1213 = vshll.u32 %v1093, 16
        %v1215 = vor.u32 %v1212, %v1213
        %v1216 = vsel %vm1098, %v1208, %v1215
        %v1217 = vrot.slane %v1212, 4
        %v1219 = vshrl.u32 %v1094, 16
        %v1221 = vrot.slane %v1219, 7
        %v1222 = vshll.u32 %v1094, 16
        %v1224 = vor.u32 %v1221, %v1222
        %v1225 = vrot.slane %v1221, 4
        %v1227 = vshrl.u32 %v1095, 16
        %v1229 = vrot.slane %v1227, 7
        %v1230 = vshll.u32 %v1095, 16
        %v1232 = vor.u32 %v1229, %v1230
        %v1233 = vsel %vm1098, %v1225, %v1232
        %v1234 = vrot.slane %v1229, 4
        %vm1259 = vcmask 519168
        %vm1260 = vsmask.f32 7938
        %vm1261 = vmand %vm1259, %vm1260
        %v1262 = vld [vmem:[#allocation2] sm:$0xf]
        %v1263 = vsel %vm1261, %v1105, %v1262
        %1264 = vst [vmem:[#allocation2] sm:$0xf] %v1263
        %vm1265 = vcmask 519168
        %1266 = vst.msk [vmem:[#allocation2 + $0x4] sm:$0xf] %vm1265, %v1114
        %vm1267 = vcmask 516096
        %vm1268 = vmand %vm1267, %vm1096
        %v1269 = vld [vmem:[#allocation2 + $0x8] sm:$0x1]
        %v1270 = vsel %vm1268, %v1115, %v1269
        %1271 = vst [vmem:[#allocation2 + $0x8] sm:$0x1] %v1270
        %v1272 = vld [vmem:[#allocation2 + $0xc] sm:$0xf]
        %v1273 = vsel %vm1261, %v1122, %v1272
        %1274 = vst [vmem:[#allocation2 + $0xc] sm:$0xf] %v1273
        %1275 = vst.msk [vmem:[#allocation2 + $0x10] sm:$0xf] %vm1265, %v1131
        %v1276 = vld [vmem:[#allocation2 + $0x14] sm:$0x1]
        %v1277 = vsel %vm1268, %v1132, %v1276
        %1278 = vst [vmem:[#allocation2 + $0x14] sm:$0x1] %v1277
        %v1279 = vld [vmem:[#allocation2 + $0x18] sm:$0xf]
        %v1280 = vsel %vm1261, %v1139, %v1279
        %1281 = vst [vmem:[#allocation2 + $0x18] sm:$0xf] %v1280
        %1282 = vst.msk [vmem:[#allocation2 + $0x1c] sm:$0xf] %vm1265, %v1148
        %v1283 = vld [vmem:[#allocation2 + $0x20] sm:$0x1]
        %v1284 = vsel %vm1268, %v1149, %v1283
        %1285 = vst [vmem:[#allocation2 + $0x20] sm:$0x1] %v1284
        %v1286 = vld [vmem:[#allocation2 + $0x24] sm:$0xf]
        %v1287 = vsel %vm1261, %v1156, %v1286
        %1288 = vst [vmem:[#allocation2 + $0x24] sm:$0xf] %v1287
        %1289 = vst.msk [vmem:[#allocation2 + $0x28] sm:$0xf] %vm1265, %v1165
        %v1290 = vld [vmem:[#allocation2 + $0x2c] sm:$0x1]
        %v1291 = vsel %vm1268, %v1166, %v1290
        %1292 = vst [vmem:[#allocation2 + $0x2c] sm:$0x1] %v1291
        %v1293 = vld [vmem:[#allocation2 + $0x30] sm:$0xf]
        %v1294 = vsel %vm1261, %v1173, %v1293
        %1295 = vst [vmem:[#allocation2 + $0x30] sm:$0xf] %v1294
        %1296 = vst.msk [vmem:[#allocation2 + $0x34] sm:$0xf] %vm1265, %v1182
        %v1297 = vld [vmem:[#allocation2 + $0x38] sm:$0x1]
        %v1298 = vsel %vm1268, %v1183, %v1297
        %1299 = vst [vmem:[#allocation2 + $0x38] sm:$0x1] %v1298
        %v1300 = vld [vmem:[#allocation2 + $0x3c] sm:$0xf]
        %v1301 = vsel %vm1261, %v1190, %v1300
        %1302 = vst [vmem:[#allocation2 + $0x3c] sm:$0xf] %v1301
        %1303 = vst.msk [vmem:[#allocation2 + $0x40] sm:$0xf] %vm1265, %v1199
        %v1304 = vld [vmem:[#allocation2 + $0x44] sm:$0x1]
        %v1305 = vsel %vm1268, %v1200, %v1304
        %1306 = vst [vmem:[#allocation2 + $0x44] sm:$0x1] %v1305
        %v1307 = vld [vmem:[#allocation2 + $0x48] sm:$0xf]
        %v1308 = vsel %vm1261, %v1207, %v1307
        %1309 = vst [vmem:[#allocation2 + $0x48] sm:$0xf] %v1308
        %1310 = vst.msk [vmem:[#allocation2 + $0x4c] sm:$0xf] %vm1265, %v1216
        %v1311 = vld [vmem:[#allocation2 + $0x50] sm:$0x1]
        %v1312 = vsel %vm1268, %v1217, %v1311
        %1313 = vst [vmem:[#allocation2 + $0x50] sm:$0x1] %v1312
        %v1314 = vld [vmem:[#allocation2 + $0x54] sm:$0xf]
        %v1315 = vsel %vm1261, %v1224, %v1314
        %1316 = vst [vmem:[#allocation2 + $0x54] sm:$0xf] %v1315
        %1317 = vst.msk [vmem:[#allocation2 + $0x58] sm:$0xf] %vm1265, %v1233
        %v1318 = vld [vmem:[#allocation2 + $0x5c] sm:$0x1]
        %v1319 = vsel %vm1268, %v1234, %v1318
        %1320 = vst [vmem:[#allocation2 + $0x5c] sm:$0x1] %v1319
        %v1321 = vld [vmem:[#allocation2] sm:$0x1]
        %v1322 = vsel %vm1268, 0, %v1321
        %1323 = vst [vmem:[#allocation2] sm:$0x1] %v1322
        %v1324 = vld [vmem:[#allocation2 + $0xc] sm:$0x1]
        %v1325 = vsel %vm1268, 0, %v1324
        %1326 = vst [vmem:[#allocation2 + $0xc] sm:$0x1] %v1325
        %v1327 = vld [vmem:[#allocation2 + $0x18] sm:$0x1]
        %v1328 = vsel %vm1268, 0, %v1327
        %1329 = vst [vmem:[#allocation2 + $0x18] sm:$0x1] %v1328
        %v1330 = vld [vmem:[#allocation2 + $0x24] sm:$0x1]
        %v1331 = vsel %vm1268, 0, %v1330
        %1332 = vst [vmem:[#allocation2 + $0x24] sm:$0x1] %v1331
        %v1333 = vld [vmem:[#allocation2 + $0x30] sm:$0x1]
        %v1334 = vsel %vm1268, 0, %v1333
        %1335 = vst [vmem:[#allocation2 + $0x30] sm:$0x1] %v1334
        %v1336 = vld [vmem:[#allocation2 + $0x3c] sm:$0x1]
        %v1337 = vsel %vm1268, 0, %v1336
        %1338 = vst [vmem:[#allocation2 + $0x3c] sm:$0x1] %v1337
        %v1339 = vld [vmem:[#allocation2 + $0x48] sm:$0x1]
        %v1340 = vsel %vm1268, 0, %v1339
        %1341 = vst [vmem:[#allocation2 + $0x48] sm:$0x1] %v1340
        %v1342 = vld [vmem:[#allocation2 + $0x54] sm:$0x1]
        %v1343 = vsel %vm1268, 0, %v1342
        %1344 = vst [vmem:[#allocation2 + $0x54] sm:$0x1] %v1343
        %v1345 = vld [vmem:[#allocation2 + $0x8] sm:$0xf]
        %v1346 = vsel %vm1261, 0, %v1345
        %1347 = vst [vmem:[#allocation2 + $0x8] sm:$0xf] %v1346
        %v1348 = vld [vmem:[#allocation2 + $0x14] sm:$0xf]
        %v1349 = vsel %vm1261, 0, %v1348
        %1350 = vst [vmem:[#allocation2 + $0x14] sm:$0xf] %v1349
        %v1351 = vld [vmem:[#allocation2 + $0x20] sm:$0xf]
        %v1352 = vsel %vm1261, 0, %v1351
        %1353 = vst [vmem:[#allocation2 + $0x20] sm:$0xf] %v1352
        %v1354 = vld [vmem:[#allocation2 + $0x2c] sm:$0xf]
        %v1355 = vsel %vm1261, 0, %v1354
        %1356 = vst [vmem:[#allocation2 + $0x2c] sm:$0xf] %v1355
        %v1357 = vld [vmem:[#allocation2 + $0x38] sm:$0xf]
        %v1358 = vsel %vm1261, 0, %v1357
        %1359 = vst [vmem:[#allocation2 + $0x38] sm:$0xf] %v1358
        %v1360 = vld [vmem:[#allocation2 + $0x44] sm:$0xf]
        %v1361 = vsel %vm1261, 0, %v1360
        %1362 = vst [vmem:[#allocation2 + $0x44] sm:$0xf] %v1361
        %v1363 = vld [vmem:[#allocation2 + $0x50] sm:$0xf]
        %v1364 = vsel %vm1261, 0, %v1363
        %1365 = vst [vmem:[#allocation2 + $0x50] sm:$0xf] %v1364
        %v1366 = vld [vmem:[#allocation2 + $0x5c] sm:$0xf]
        %v1367 = vsel %vm1261, 0, %v1366
        %1368 = vst [vmem:[#allocation2 + $0x5c] sm:$0xf] %v1367
        %p1369 = scmp.eq.s32.totalorder %s26, 0
        // Predicated region
        $region49: #{tpu_custom_call.1} parent=47 // pred_check
          %p1370 = pneg %p1369
        $region50: #{tpu_custom_call.1} parent=47 // pred_check_branch
          %1372 = sbr.rel (%p1370) target = $region52
        $region51: #{tpu_custom_call.1} parent=47 // pred_region
          %1373 = vst.msk [vmem:[#allocation2] sm:$0xf] %vm1265, 0
          %1374 = vst.msk [vmem:[#allocation2 + $0x4] sm:$0xf] %vm1265, 0
          %1375 = vst.msk [vmem:[#allocation2 + $0x8] sm:$0xf] %vm1265, 0
          %1376 = vst.msk [vmem:[#allocation2 + $0xc] sm:$0xf] %vm1265, 0
          %1377 = vst.msk [vmem:[#allocation2 + $0x10] sm:$0xf] %vm1265, 0
          %1378 = vst.msk [vmem:[#allocation2 + $0x14] sm:$0xf] %vm1265, 0
        $region52: #{tpu_custom_call.1} parent=47 // pred_fallthru
          _
        %p1379 = scmp.eq.s32.totalorder %s26, 3
        // Predicated region
        $region53: #{tpu_custom_call.1} parent=47 // pred_check
          %p1380 = pneg %p1379
        $region54: #{tpu_custom_call.1} parent=47 // pred_check_branch
          %1382 = sbr.rel (%p1380) target = $region56
        $region55: #{tpu_custom_call.1} parent=47 // pred_region
          %s1383 = scalar_lea.vmem [#allocation2], 72
          %1384 = vst.msk [vmem:[%s1383] sm:$0xf] %vm1265, 0
          %1385 = vst.msk [vmem:[%s1383 + $0x4] sm:$0xf] %vm1265, 0
          %1386 = vst.msk [vmem:[%s1383 + $0x8] sm:$0xf] %vm1265, 0
          %1387 = vst.msk [vmem:[%s1383 + $0xc] sm:$0xf] %vm1265, 0
          %1388 = vst.msk [vmem:[%s1383 + $0x10] sm:$0xf] %vm1265, 0
          %1389 = vst.msk [vmem:[%s1383 + $0x14] sm:$0xf] %vm1265, 0
        $region56: #{tpu_custom_call.1} parent=47 // pred_fallthru
          _
        %v1390 = vld [vmem:[#allocation2] sm:$0xf]
        %v1391 = vld [vmem:[#allocation2 + $0x4] sm:$0xf]
        %v1392 = vld [vmem:[#allocation2 + $0x8] sm:$0xf]
        %v1393 = vld [vmem:[#allocation2 + $0xc] sm:$0xf]
        %v1394 = vld [vmem:[#allocation2 + $0x10] sm:$0xf]
        %v1395 = vld [vmem:[#allocation2 + $0x14] sm:$0xf]
        %v1396 = vld [vmem:[#allocation2 + $0x18] sm:$0xf]
        %v1397 = vld [vmem:[#allocation2 + $0x1c] sm:$0xf]
        %v1398 = vld [vmem:[#allocation2 + $0x20] sm:$0xf]
        %v1399 = vld [vmem:[#allocation2 + $0x24] sm:$0xf]
        %v1400 = vld [vmem:[#allocation2 + $0x28] sm:$0xf]
        %v1401 = vld [vmem:[#allocation2 + $0x2c] sm:$0xf]
        %v1402 = vld [vmem:[#allocation2 + $0x30] sm:$0xf]
        %v1403 = vld [vmem:[#allocation2 + $0x34] sm:$0xf]
        %v1404 = vld [vmem:[#allocation2 + $0x38] sm:$0xf]
        %v1405 = vld [vmem:[#allocation2 + $0x3c] sm:$0xf]
        %v1406 = vld [vmem:[#allocation2 + $0x40] sm:$0xf]
        %v1407 = vld [vmem:[#allocation2 + $0x44] sm:$0xf]
        %v1408 = vld [vmem:[#allocation2 + $0x48] sm:$0xf]
        %v1409 = vld [vmem:[#allocation2 + $0x4c] sm:$0xf]
        %v1410 = vld [vmem:[#allocation2 + $0x50] sm:$0xf]
        %v1411 = vld [vmem:[#allocation2 + $0x54] sm:$0xf]
        %v1412 = vld [vmem:[#allocation2 + $0x58] sm:$0xf]
        %v1413 = vld [vmem:[#allocation2 + $0x5c] sm:$0xf]
        %v1414 = vld [vmem:[%s2] sm:$0xf]
        %v1415 = vld [vmem:[%s2 + $0x4] sm:$0xf]
        %v1416 = vld [vmem:[%s2 + $0x8] sm:$0xf]
        %v1417 = vld [vmem:[%s2 + $0xc] sm:$0xf]
        %v1418 = vld [vmem:[%s2 + $0x10] sm:$0xf]
        %v1419 = vld [vmem:[%s2 + $0x14] sm:$0xf]
        %v1420 = vld [vmem:[%s2 + $0x18] sm:$0xf]
        %v1421 = vld [vmem:[%s2 + $0x1c] sm:$0xf]
        %v1446 = vunpack.c.l.b16 %v1390
        %v1447 = vunpack.c.l.b16 %v1391
        %v1448 = vunpack.c.l.b16 %v1392
        %v1449 = vunpack.c.l.b16 %v1393
        %v1450 = vunpack.c.l.b16 %v1394
        %v1451 = vunpack.c.l.b16 %v1395
        %v1452 = vunpack.c.l.b16 %v1396
        %v1453 = vunpack.c.l.b16 %v1397
        %v1454 = vunpack.c.l.b16 %v1398
        %v1455 = vunpack.c.l.b16 %v1399
        %v1456 = vunpack.c.l.b16 %v1400
        %v1457 = vunpack.c.l.b16 %v1401
        %v1458 = vunpack.c.l.b16 %v1402
        %v1459 = vunpack.c.l.b16 %v1403
        %v1460 = vunpack.c.l.b16 %v1404
        %v1461 = vunpack.c.l.b16 %v1405
        %v1462 = vunpack.c.l.b16 %v1406
        %v1463 = vunpack.c.l.b16 %v1407
        %v1464 = vunpack.c.l.b16 %v1408
        %v1465 = vunpack.c.l.b16 %v1409
        %v1466 = vunpack.c.l.b16 %v1410
        %v1467 = vunpack.c.l.b16 %v1411
        %v1468 = vunpack.c.l.b16 %v1412
        %v1469 = vunpack.c.l.b16 %v1413
        %v1470 = vpack.c.b16 %v1447, %v1446
        %v1471 = vpack.c.b16 %v1449, %v1448
        %v1472 = vpack.c.b16 %v1451, %v1450
        %v1473 = vpack.c.b16 %v1453, %v1452
        %v1474 = vpack.c.b16 %v1455, %v1454
        %v1475 = vpack.c.b16 %v1457, %v1456
        %v1476 = vpack.c.b16 %v1459, %v1458
        %v1477 = vpack.c.b16 %v1461, %v1460
        %v1478 = vpack.c.b16 %v1463, %v1462
        %v1479 = vpack.c.b16 %v1465, %v1464
        %v1480 = vpack.c.b16 %v1467, %v1466
        %v1481 = vpack.c.b16 %v1469, %v1468
        %v1490 = vunpack.c.l.b16 %v1414
        %v1491 = vunpack.c.l.b16 %v1415
        %v1492 = vunpack.c.l.b16 %v1416
        %v1493 = vunpack.c.l.b16 %v1417
        %v1494 = vunpack.c.l.b16 %v1418
        %v1495 = vunpack.c.l.b16 %v1419
        %v1496 = vunpack.c.l.b16 %v1420
        %v1497 = vunpack.c.l.b16 %v1421
        %v1498 = vpack.c.b16 %v1491, %v1490
        %v1499 = vpack.c.b16 %v1493, %v1492
        %v1500 = vpack.c.b16 %v1495, %v1494
        %v1501 = vpack.c.b16 %v1497, %v1496
        %v1507 = vsel %vm1039, %v1470, 0
        %v1510 = vsel %vm1039, %v1471, 0
        %v1513 = vsel %vm1039, %v1472, 0
        %v1516 = vsel %vm1039, %v1473, 0
        %v1519 = vsel %vm1039, %v1474, 0
        %v1522 = vsel %vm1039, %v1475, 0
        %v1525 = vsel %vm1039, %v1476, 0
        %v1528 = vsel %vm1039, %v1477, 0
        %v1531 = vsel %vm1039, %v1478, 0
        %v1534 = vsel %vm1039, %v1479, 0
        %v1537 = vsel %vm1039, %v1480, 0
        %v1540 = vsel %vm1039, %v1481, 0
        %1542 = vmatprep.subr.bf16.mxu0 0
        %1543 = vmatpush1.bf16.msra.mxu0 %v1498
        %1544 = vmatprep.subr.bf16.mxu0 0
        %1545 = vmatpush1.bf16.msra.mxu0 %v1499
        %1546 = vmatprep.subr.bf16.mxu0 0
        %1547 = vmatpush1.bf16.msra.mxu0 %v1500
        %1548 = vmatprep.subr.bf16.mxu0 0
        %1549 = vmatpush1.bf16.msra.mxu0 %v1501
        %1550 = vmatprep.subr.bf16.mxu0 0
        %1551 = vmatpush1.bf16.msra.mxu0 0
        %1552 = vmatprep.subr.bf16.mxu0 0
        %1553 = vmatpush1.bf16.msra.mxu0 0
        %1554 = vmatprep.subr.bf16.mxu0 0
        %1555 = vmatpush1.bf16.msra.mxu0 0
        %1556 = vmatprep.subr.bf16.mxu0 0
        %1557 = vmatpush1.bf16.msra.mxu0 0
        %1558 = vmatprep.subr.bf16.mxu0 0
        %1559 = vmatpush1.bf16.msra.mxu0 0
        %1560 = vmatprep.subr.bf16.mxu0 0
        %1561 = vmatpush1.bf16.msra.mxu0 0
        %1562 = vmatprep.subr.bf16.mxu0 0
        %1563 = vmatpush1.bf16.msra.mxu0 0
        %1564 = vmatprep.subr.bf16.mxu0 0
        %1565 = vmatpush1.bf16.msra.mxu0 0
        %1566 = vmatprep.subr.bf16.mxu0 0
        %1567 = vmatpush1.bf16.msra.mxu0 0
        %1568 = vmatprep.subr.bf16.mxu0 0
        %1569 = vmatpush1.bf16.msra.mxu0 0
        %1570 = vmatprep.subr.bf16.mxu0 0
        %1571 = vmatpush1.bf16.msra.mxu0 0
        %1572 = vmatprep.subr.bf16.mxu0 0
        %1573 = vmatpush1.bf16.msra.mxu0 0
        %1574 = vmatprep.mubr.bf16.mxu0 0
        %1575 = vmatmul.mubr.bf16.gmra.mrb[0].mxu0 %v1507
        %v1576 = vpop.f32.mrb[0].mxu0
        %v1577 = vadd.f32 0.0, %v1576
        %v1578 = vpop.f32.mrb[0].mxu0
        %v1579 = vpop.f32.mrb[0].mxu0
        %v1580 = vadd.f32 0.0, %v1579
        %v1581 = vpop.f32.mrb[0].mxu0
        %1582 = vmatprep.mubr.bf16.mxu0 0
        %1583 = vmatmul.mubr.bf16.gmra.mrb[0].mxu0 %v1510
        %v1584 = vpop.f32.mrb[0].mxu0
        %v1585 = vadd.f32 0.0, %v1584
        %v1586 = vpop.f32.mrb[0].mxu0
        %v1587 = vpop.f32.mrb[0].mxu0
        %v1588 = vadd.f32 0.0, %v1587
        %v1589 = vpop.f32.mrb[0].mxu0
        %1590 = vmatprep.mubr.bf16.mxu0 0
        %1591 = vmatmul.mubr.bf16.gmra.mrb[0].mxu0 %v1513
        %v1592 = vpop.f32.mrb[0].mxu0
        %v1593 = vadd.f32 0.0, %v1592
        %v1594 = vpop.f32.mrb[0].mxu0
        %v1595 = vpop.f32.mrb[0].mxu0
        %v1596 = vadd.f32 0.0, %v1595
        %v1597 = vpop.f32.mrb[0].mxu0
        %1598 = vmatprep.mubr.bf16.mxu0 0
        %1599 = vmatmul.mubr.bf16.gmra.mrb[0].mxu0 %v1516
        %v1600 = vpop.f32.mrb[0].mxu0
        %v1601 = vadd.f32 0.0, %v1600
        %v1602 = vpop.f32.mrb[0].mxu0
        %v1603 = vpop.f32.mrb[0].mxu0
        %v1604 = vadd.f32 0.0, %v1603
        %v1605 = vpop.f32.mrb[0].mxu0
        %1606 = vmatprep.mubr.bf16.mxu0 0
        %1607 = vmatmul.mubr.bf16.gmra.mrb[0].mxu0 %v1519
        %v1608 = vpop.f32.mrb[0].mxu0
        %v1609 = vadd.f32 0.0, %v1608
        %v1610 = vpop.f32.mrb[0].mxu0
        %v1611 = vpop.f32.mrb[0].mxu0
        %v1612 = vadd.f32 0.0, %v1611
        %v1613 = vpop.f32.mrb[0].mxu0
        %1614 = vmatprep.mubr.bf16.mxu0 0
        %1615 = vmatmul.mubr.bf16.gmra.mrb[0].mxu0 %v1522
        %v1616 = vpop.f32.mrb[0].mxu0
        %v1617 = vadd.f32 0.0, %v1616
        %v1618 = vpop.f32.mrb[0].mxu0
        %v1619 = vpop.f32.mrb[0].mxu0
        %v1620 = vadd.f32 0.0, %v1619
        %v1621 = vpop.f32.mrb[0].mxu0
        %1622 = vmatprep.mubr.bf16.mxu0 0
        %1623 = vmatmul.mubr.bf16.gmra.mrb[0].mxu0 %v1525
        %v1624 = vpop.f32.mrb[0].mxu0
        %v1625 = vadd.f32 0.0, %v1624
        %v1626 = vpop.f32.mrb[0].mxu0
        %v1627 = vpop.f32.mrb[0].mxu0
        %v1628 = vadd.f32 0.0, %v1627
        %v1629 = vpop.f32.mrb[0].mxu0
        %1630 = vmatprep.mubr.bf16.mxu0 0
        %1631 = vmatmul.mubr.bf16.gmra.mrb[0].mxu0 %v1528
        %v1632 = vpop.f32.mrb[0].mxu0
        %v1633 = vadd.f32 0.0, %v1632
        %v1634 = vpop.f32.mrb[0].mxu0
        %v1635 = vpop.f32.mrb[0].mxu0
        %v1636 = vadd.f32 0.0, %v1635
        %v1637 = vpop.f32.mrb[0].mxu0
        %1638 = vmatprep.mubr.bf16.mxu0 0
        %1639 = vmatmul.mubr.bf16.gmra.mrb[0].mxu0 %v1531
        %v1640 = vpop.f32.mrb[0].mxu0
        %v1641 = vadd.f32 0.0, %v1640
        %v1642 = vpop.f32.mrb[0].mxu0
        %v1643 = vpop.f32.mrb[0].mxu0
        %v1644 = vadd.f32 0.0, %v1643
        %v1645 = vpop.f32.mrb[0].mxu0
        %1646 = vmatprep.mubr.bf16.mxu0 0
        %1647 = vmatmul.mubr.bf16.gmra.mrb[0].mxu0 %v1534
        %v1648 = vpop.f32.mrb[0].mxu0
        %v1649 = vadd.f32 0.0, %v1648
        %v1650 = vpop.f32.mrb[0].mxu0
        %v1651 = vpop.f32.mrb[0].mxu0
        %v1652 = vadd.f32 0.0, %v1651
        %v1653 = vpop.f32.mrb[0].mxu0
        %1654 = vmatprep.mubr.bf16.mxu0 0
        %1655 = vmatmul.mubr.bf16.gmra.mrb[0].mxu0 %v1537
        %v1656 = vpop.f32.mrb[0].mxu0
        %v1657 = vadd.f32 0.0, %v1656
        %v1658 = vpop.f32.mrb[0].mxu0
        %v1659 = vpop.f32.mrb[0].mxu0
        %v1660 = vadd.f32 0.0, %v1659
        %v1661 = vpop.f32.mrb[0].mxu0
        %1662 = vmatprep.mubr.bf16.mxu0 0
        %1663 = vmatmul.mubr.bf16.gmra.mrb[0].mxu0 %v1540
        %v1664 = vpop.f32.mrb[0].mxu0
        %v1665 = vadd.f32 0.0, %v1664
        %v1666 = vpop.f32.mrb[0].mxu0
        %v1667 = vpop.f32.mrb[0].mxu0
        %v1668 = vadd.f32 0.0, %v1667
        %v1669 = vpop.f32.mrb[0].mxu0
        %1670 = vdwg.mxu0
        %vm1689 = vcmask 1046528
        %v1690 = vrot.slane %v1577, 1
        %v1691 = vrot.slane %v1580, 1
        %v1692 = vsel %vm1689, %v1690, %v1691
        %v1693 = vrot.slane %v1585, 1
        %v1694 = vsel %vm1689, %v1691, %v1693
        %v1695 = vrot.slane %v1588, 1
        %v1696 = vrot.slane %v1593, 1
        %v1697 = vsel %vm1689, %v1695, %v1696
        %v1698 = vrot.slane %v1596, 1
        %v1699 = vsel %vm1689, %v1696, %v1698
        %v1700 = vrot.slane %v1601, 1
        %v1701 = vrot.slane %v1604, 1
        %v1702 = vsel %vm1689, %v1700, %v1701
        %v1703 = vrot.slane %v1609, 1
        %v1704 = vsel %vm1689, %v1701, %v1703
        %v1705 = vrot.slane %v1612, 1
        %v1706 = vrot.slane %v1617, 1
        %v1707 = vsel %vm1689, %v1705, %v1706
        %v1708 = vrot.slane %v1620, 1
        %v1709 = vsel %vm1689, %v1706, %v1708
        %v1710 = vrot.slane %v1625, 1
        %v1711 = vrot.slane %v1628, 1
        %v1712 = vsel %vm1689, %v1710, %v1711
        %v1713 = vrot.slane %v1633, 1
        %v1714 = vsel %vm1689, %v1711, %v1713
        %v1715 = vrot.slane %v1636, 1
        %v1716 = vrot.slane %v1641, 1
        %v1717 = vsel %vm1689, %v1715, %v1716
        %v1718 = vrot.slane %v1644, 1
        %v1719 = vsel %vm1689, %v1716, %v1718
        %1720 = vrot.lane.b32.xlu0 %v1692, 124
        %v1721 = vpop.permute.xlu0 %1720
        %1722 = vrot.lane.b32.xlu0 %v1694, 124
        %v1723 = vpop.permute.xlu0 %1722
        %1724 = vrot.lane.b32.xlu0 %v1697, 124
        %v1725 = vpop.permute.xlu0 %1724
        %1726 = vrot.lane.b32.xlu0 %v1699, 124
        %v1727 = vpop.permute.xlu0 %1726
        %1728 = vrot.lane.b32.xlu0 %v1702, 124
        %v1729 = vpop.permute.xlu0 %1728
        %1730 = vrot.lane.b32.xlu0 %v1704, 124
        %v1731 = vpop.permute.xlu0 %1730
        %1732 = vrot.lane.b32.xlu0 %v1707, 124
        %v1733 = vpop.permute.xlu0 %1732
        %1734 = vrot.lane.b32.xlu0 %v1709, 124
        %v1735 = vpop.permute.xlu0 %1734
        %1736 = vrot.lane.b32.xlu0 %v1712, 124
        %v1737 = vpop.permute.xlu0 %1736
        %1738 = vrot.lane.b32.xlu0 %v1714, 124
        %v1739 = vpop.permute.xlu0 %1738
        %1740 = vrot.lane.b32.xlu0 %v1717, 124
        %v1741 = vpop.permute.xlu0 %1740
        %1742 = vrot.lane.b32.xlu0 %v1719, 124
        %v1743 = vpop.permute.xlu0 %1742
        %v1756 = vadd.f32 %v1577, %v1721
        %v1757 = vadd.f32 %v1580, %v1723
        %v1758 = vadd.f32 %v1588, %v1725
        %v1759 = vadd.f32 %v1593, %v1727
        %v1760 = vadd.f32 %v1601, %v1729
        %v1761 = vadd.f32 %v1604, %v1731
        %v1762 = vadd.f32 %v1612, %v1733
        %v1763 = vadd.f32 %v1617, %v1735
        %v1764 = vadd.f32 %v1625, %v1737
        %v1765 = vadd.f32 %v1628, %v1739
        %v1766 = vadd.f32 %v1636, %v1741
        %v1767 = vadd.f32 %v1641, %v1743
        %vm1768 = vcmask 1045504
        %v1769 = vrot.slane %v1577, 2
        %v1770 = vrot.slane %v1580, 2
        %v1771 = vsel %vm1768, %v1769, %v1770
        %v1772 = vrot.slane %v1585, 2
        %v1773 = vsel %vm1768, %v1770, %v1772
        %v1774 = vrot.slane %v1588, 2
        %v1775 = vrot.slane %v1593, 2
        %v1776 = vsel %vm1768, %v1774, %v1775
        %v1777 = vrot.slane %v1596, 2
        %v1778 = vsel %vm1768, %v1775, %v1777
        %v1779 = vrot.slane %v1601, 2
        %v1780 = vrot.slane %v1604, 2
        %v1781 = vsel %vm1768, %v1779, %v1780
        %v1782 = vrot.slane %v1609, 2
        %v1783 = vsel %vm1768, %v1780, %v1782
        %v1784 = vrot.slane %v1612, 2
        %v1785 = vrot.slane %v1617, 2
        %v1786 = vsel %vm1768, %v1784, %v1785
        %v1787 = vrot.slane %v1620, 2
        %v1788 = vsel %vm1768, %v1785, %v1787
        %v1789 = vrot.slane %v1625, 2
        %v1790 = vrot.slane %v1628, 2
        %v1791 = vsel %vm1768, %v1789, %v1790
        %v1792 = vrot.slane %v1633, 2
        %v1793 = vsel %vm1768, %v1790, %v1792
        %v1794 = vrot.slane %v1636, 2
        %v1795 = vrot.slane %v1641, 2
        %v1796 = vsel %vm1768, %v1794, %v1795
        %v1797 = vrot.slane %v1644, 2
        %v1798 = vsel %vm1768, %v1795, %v1797
        %1799 = vrot.lane.b32.xlu0 %v1771, 120
        %v1800 = vpop.permute.xlu0 %1799
        %1801 = vrot.lane.b32.xlu0 %v1773, 120
        %v1802 = vpop.permute.xlu0 %1801
        %1803 = vrot.lane.b32.xlu0 %v1776, 120
        %v1804 = vpop.permute.xlu0 %1803
        %1805 = vrot.lane.b32.xlu0 %v1778, 120
        %v1806 = vpop.permute.xlu0 %1805
        %1807 = vrot.lane.b32.xlu0 %v1781, 120
        %v1808 = vpop.permute.xlu0 %1807
        %1809 = vrot.lane.b32.xlu0 %v1783, 120
        %v1810 = vpop.permute.xlu0 %1809
        %1811 = vrot.lane.b32.xlu0 %v1786, 120
        %v1812 = vpop.permute.xlu0 %1811
        %1813 = vrot.lane.b32.xlu0 %v1788, 120
        %v1814 = vpop.permute.xlu0 %1813
        %1815 = vrot.lane.b32.xlu0 %v1791, 120
        %v1816 = vpop.permute.xlu0 %1815
        %1817 = vrot.lane.b32.xlu0 %v1793, 120
        %v1818 = vpop.permute.xlu0 %1817
        %1819 = vrot.lane.b32.xlu0 %v1796, 120
        %v1820 = vpop.permute.xlu0 %1819
        %1821 = vrot.lane.b32.xlu0 %v1798, 120
        %v1822 = vpop.permute.xlu0 %1821
        %v1835 = vadd.f32 %v1756, %v1800
        %v1836 = vadd.f32 %v1757, %v1802
        %v1837 = vadd.f32 %v1758, %v1804
        %v1838 = vadd.f32 %v1759, %v1806
        %v1839 = vadd.f32 %v1760, %v1808
        %v1840 = vadd.f32 %v1761, %v1810
        %v1841 = vadd.f32 %v1762, %v1812
        %v1842 = vadd.f32 %v1763, %v1814
        %v1843 = vadd.f32 %v1764, %v1816
        %v1844 = vadd.f32 %v1765, %v1818
        %v1845 = vadd.f32 %v1766, %v1820
        %v1846 = vadd.f32 %v1767, %v1822
        %1849 = vrot.lane.b32.xlu0 %v1588, 116
        %v1850 = vpop.permute.xlu0 %1849
        %1851 = vrot.lane.b32.xlu0 %v1593, 116
        %v1852 = vpop.permute.xlu0 %1851
        %1853 = vrot.lane.b32.xlu0 %v1601, 116
        %v1854 = vpop.permute.xlu0 %1853
        %1855 = vrot.lane.b32.xlu0 %v1604, 116
        %v1856 = vpop.permute.xlu0 %1855
        %1857 = vrot.lane.b32.xlu0 %v1612, 116
        %v1858 = vpop.permute.xlu0 %1857
        %1859 = vrot.lane.b32.xlu0 %v1617, 116
        %v1860 = vpop.permute.xlu0 %1859
        %1861 = vrot.lane.b32.xlu0 %v1625, 116
        %v1862 = vpop.permute.xlu0 %1861
        %1863 = vrot.lane.b32.xlu0 %v1628, 116
        %v1864 = vpop.permute.xlu0 %1863
        %1865 = vrot.lane.b32.xlu0 %v1636, 116
        %v1866 = vpop.permute.xlu0 %1865
        %1867 = vrot.lane.b32.xlu0 %v1641, 116
        %v1868 = vpop.permute.xlu0 %1867
        %1869 = vrot.lane.b32.xlu0 %v1649, 116
        %v1870 = vpop.permute.xlu0 %1869
        %1871 = vrot.lane.b32.xlu0 %v1652, 116
        %v1872 = vpop.permute.xlu0 %1871
        %v1885 = vadd.f32 %v1835, %v1850
        %v1886 = vadd.f32 %v1836, %v1852
        %v1887 = vadd.f32 %v1837, %v1854
        %v1888 = vadd.f32 %v1838, %v1856
        %v1889 = vadd.f32 %v1839, %v1858
        %v1890 = vadd.f32 %v1840, %v1860
        %v1891 = vadd.f32 %v1841, %v1862
        %v1892 = vadd.f32 %v1842, %v1864
        %v1893 = vadd.f32 %v1843, %v1866
        %v1894 = vadd.f32 %v1844, %v1868
        %v1895 = vadd.f32 %v1845, %v1870
        %v1896 = vadd.f32 %v1846, %v1872
        %v1898 = vrot.slane %v1649, 1
        %v1899 = vrot.slane %v1652, 1
        %v1900 = vsel %vm1689, %v1898, %v1899
        %v1901 = vrot.slane %v1657, 1
        %v1902 = vsel %vm1689, %v1899, %v1901
        %1903 = vrot.lane.b32.xlu0 %v1697, 112
        %v1904 = vpop.permute.xlu0 %1903
        %1905 = vrot.lane.b32.xlu0 %v1699, 112
        %v1906 = vpop.permute.xlu0 %1905
        %1907 = vrot.lane.b32.xlu0 %v1702, 112
        %v1908 = vpop.permute.xlu0 %1907
        %1909 = vrot.lane.b32.xlu0 %v1704, 112
        %v1910 = vpop.permute.xlu0 %1909
        %1911 = vrot.lane.b32.xlu0 %v1707, 112
        %v1912 = vpop.permute.xlu0 %1911
        %1913 = vrot.lane.b32.xlu0 %v1709, 112
        %v1914 = vpop.permute.xlu0 %1913
        %1915 = vrot.lane.b32.xlu0 %v1712, 112
        %v1916 = vpop.permute.xlu0 %1915
        %1917 = vrot.lane.b32.xlu0 %v1714, 112
        %v1918 = vpop.permute.xlu0 %1917
        %1919 = vrot.lane.b32.xlu0 %v1717, 112
        %v1920 = vpop.permute.xlu0 %1919
        %1921 = vrot.lane.b32.xlu0 %v1719, 112
        %v1922 = vpop.permute.xlu0 %1921
        %1923 = vrot.lane.b32.xlu0 %v1900, 112
        %v1924 = vpop.permute.xlu0 %1923
        %1925 = vrot.lane.b32.xlu0 %v1902, 112
        %v1926 = vpop.permute.xlu0 %1925
        %v1939 = vadd.f32 %v1885, %v1904
        %v1940 = vadd.f32 %v1886, %v1906
        %v1941 = vadd.f32 %v1887, %v1908
        %v1942 = vadd.f32 %v1888, %v1910
        %v1943 = vadd.f32 %v1889, %v1912
        %v1944 = vadd.f32 %v1890, %v1914
        %v1945 = vadd.f32 %v1891, %v1916
        %v1946 = vadd.f32 %v1892, %v1918
        %v1947 = vadd.f32 %v1893, %v1920
        %v1948 = vadd.f32 %v1894, %v1922
        %v1949 = vadd.f32 %v1895, %v1924
        %v1950 = vadd.f32 %v1896, %v1926
        %v1951 = vrot.slane %v1649, 2
        %v1952 = vrot.slane %v1652, 2
        %v1953 = vsel %vm1768, %v1951, %v1952
        %v1954 = vrot.slane %v1657, 2
        %v1955 = vsel %vm1768, %v1952, %v1954
        %1956 = vrot.lane.b32.xlu0 %v1776, 108
        %v1957 = vpop.permute.xlu0 %1956
        %1958 = vrot.lane.b32.xlu0 %v1778, 108
        %v1959 = vpop.permute.xlu0 %1958
        %1960 = vrot.lane.b32.xlu0 %v1781, 108
        %v1961 = vpop.permute.xlu0 %1960
        %1962 = vrot.lane.b32.xlu0 %v1783, 108
        %v1963 = vpop.permute.xlu0 %1962
        %1964 = vrot.lane.b32.xlu0 %v1786, 108
        %v1965 = vpop.permute.xlu0 %1964
        %1966 = vrot.lane.b32.xlu0 %v1788, 108
        %v1967 = vpop.permute.xlu0 %1966
        %1968 = vrot.lane.b32.xlu0 %v1791, 108
        %v1969 = vpop.permute.xlu0 %1968
        %1970 = vrot.lane.b32.xlu0 %v1793, 108
        %v1971 = vpop.permute.xlu0 %1970
        %1972 = vrot.lane.b32.xlu0 %v1796, 108
        %v1973 = vpop.permute.xlu0 %1972
        %1974 = vrot.lane.b32.xlu0 %v1798, 108
        %v1975 = vpop.permute.xlu0 %1974
        %1976 = vrot.lane.b32.xlu0 %v1953, 108
        %v1977 = vpop.permute.xlu0 %1976
        %1978 = vrot.lane.b32.xlu0 %v1955, 108
        %v1979 = vpop.permute.xlu0 %1978
        %v1992 = vadd.f32 %v1939, %v1957
        %v1993 = vadd.f32 %v1940, %v1959
        %v1994 = vadd.f32 %v1941, %v1961
        %v1995 = vadd.f32 %v1942, %v1963
        %v1996 = vadd.f32 %v1943, %v1965
        %v1997 = vadd.f32 %v1944, %v1967
        %v1998 = vadd.f32 %v1945, %v1969
        %v1999 = vadd.f32 %v1946, %v1971
        %v2000 = vadd.f32 %v1947, %v1973
        %v2001 = vadd.f32 %v1948, %v1975
        %v2002 = vadd.f32 %v1949, %v1977
        %v2003 = vadd.f32 %v1950, %v1979
        %2006 = vrot.lane.b32.xlu0 %v1601, 104
        %v2007 = vpop.permute.xlu0 %2006
        %2008 = vrot.lane.b32.xlu0 %v1604, 104
        %v2009 = vpop.permute.xlu0 %2008
        %2010 = vrot.lane.b32.xlu0 %v1612, 104
        %v2011 = vpop.permute.xlu0 %2010
        %2012 = vrot.lane.b32.xlu0 %v1617, 104
        %v2013 = vpop.permute.xlu0 %2012
        %2014 = vrot.lane.b32.xlu0 %v1625, 104
        %v2015 = vpop.permute.xlu0 %2014
        %2016 = vrot.lane.b32.xlu0 %v1628, 104
        %v2017 = vpop.permute.xlu0 %2016
        %2018 = vrot.lane.b32.xlu0 %v1636, 104
        %v2019 = vpop.permute.xlu0 %2018
        %2020 = vrot.lane.b32.xlu0 %v1641, 104
        %v2021 = vpop.permute.xlu0 %2020
        %2022 = vrot.lane.b32.xlu0 %v1649, 104
        %v2023 = vpop.permute.xlu0 %2022
        %2024 = vrot.lane.b32.xlu0 %v1652, 104
        %v2025 = vpop.permute.xlu0 %2024
        %2026 = vrot.lane.b32.xlu0 %v1660, 104
        %v2027 = vpop.permute.xlu0 %2026
        %2028 = vrot.lane.b32.xlu0 %v1665, 104
        %v2029 = vpop.permute.xlu0 %2028
        %v2042 = vadd.f32 %v1992, %v2007
        %v2043 = vadd.f32 %v1993, %v2009
        %v2044 = vadd.f32 %v1994, %v2011
        %v2045 = vadd.f32 %v1995, %v2013
        %v2046 = vadd.f32 %v1996, %v2015
        %v2047 = vadd.f32 %v1997, %v2017
        %v2048 = vadd.f32 %v1998, %v2019
        %v2049 = vadd.f32 %v1999, %v2021
        %v2050 = vadd.f32 %v2000, %v2023
        %v2051 = vadd.f32 %v2001, %v2025
        %v2052 = vadd.f32 %v2002, %v2027
        %v2053 = vadd.f32 %v2003, %v2029
        %v2055 = vrot.slane %v1660, 1
        %v2056 = vrot.slane %v1665, 1
        %v2057 = vsel %vm1689, %v2055, %v2056
        %v2058 = vrot.slane %v1668, 1
        %v2059 = vsel %vm1689, %v2056, %v2058
        %2060 = vrot.lane.b32.xlu0 %v1702, 100
        %v2061 = vpop.permute.xlu0 %2060
        %2062 = vrot.lane.b32.xlu0 %v1704, 100
        %v2063 = vpop.permute.xlu0 %2062
        %2064 = vrot.lane.b32.xlu0 %v1707, 100
        %v2065 = vpop.permute.xlu0 %2064
        %2066 = vrot.lane.b32.xlu0 %v1709, 100
        %v2067 = vpop.permute.xlu0 %2066
        %2068 = vrot.lane.b32.xlu0 %v1712, 100
        %v2069 = vpop.permute.xlu0 %2068
        %2070 = vrot.lane.b32.xlu0 %v1714, 100
        %v2071 = vpop.permute.xlu0 %2070
        %2072 = vrot.lane.b32.xlu0 %v1717, 100
        %v2073 = vpop.permute.xlu0 %2072
        %2074 = vrot.lane.b32.xlu0 %v1719, 100
        %v2075 = vpop.permute.xlu0 %2074
        %2076 = vrot.lane.b32.xlu0 %v1900, 100
        %v2077 = vpop.permute.xlu0 %2076
        %2078 = vrot.lane.b32.xlu0 %v1902, 100
        %v2079 = vpop.permute.xlu0 %2078
        %2080 = vrot.lane.b32.xlu0 %v2057, 100
        %v2081 = vpop.permute.xlu0 %2080
        %2082 = vrot.lane.b32.xlu0 %v2059, 100
        %v2083 = vpop.permute.xlu0 %2082
        %v2096 = vadd.f32 %v2042, %v2061
        %v2097 = vadd.f32 %v2043, %v2063
        %v2098 = vadd.f32 %v2044, %v2065
        %v2099 = vadd.f32 %v2045, %v2067
        %v2100 = vadd.f32 %v2046, %v2069
        %v2101 = vadd.f32 %v2047, %v2071
        %v2102 = vadd.f32 %v2048, %v2073
        %v2103 = vadd.f32 %v2049, %v2075
        %v2104 = vadd.f32 %v2050, %v2077
        %v2105 = vadd.f32 %v2051, %v2079
        %v2106 = vadd.f32 %v2052, %v2081
        %v2107 = vadd.f32 %v2053, %v2083
        %v2108 = vrot.slane %v1660, 2
        %v2109 = vrot.slane %v1665, 2
        %v2110 = vsel %vm1768, %v2108, %v2109
        %v2111 = vrot.slane %v1668, 2
        %v2112 = vsel %vm1768, %v2109, %v2111
        %2113 = vrot.lane.b32.xlu0 %v1781, 96
        %v2114 = vpop.permute.xlu0 %2113
        %2115 = vrot.lane.b32.xlu0 %v1783, 96
        %v2116 = vpop.permute.xlu0 %2115
        %2117 = vrot.lane.b32.xlu0 %v1786, 96
        %v2118 = vpop.permute.xlu0 %2117
        %2119 = vrot.lane.b32.xlu0 %v1788, 96
        %v2120 = vpop.permute.xlu0 %2119
        %2121 = vrot.lane.b32.xlu0 %v1791, 96
        %v2122 = vpop.permute.xlu0 %2121
        %2123 = vrot.lane.b32.xlu0 %v1793, 96
        %v2124 = vpop.permute.xlu0 %2123
        %2125 = vrot.lane.b32.xlu0 %v1796, 96
        %v2126 = vpop.permute.xlu0 %2125
        %2127 = vrot.lane.b32.xlu0 %v1798, 96
        %v2128 = vpop.permute.xlu0 %2127
        %2129 = vrot.lane.b32.xlu0 %v1953, 96
        %v2130 = vpop.permute.xlu0 %2129
        %2131 = vrot.lane.b32.xlu0 %v1955, 96
        %v2132 = vpop.permute.xlu0 %2131
        %2133 = vrot.lane.b32.xlu0 %v2110, 96
        %v2134 = vpop.permute.xlu0 %2133
        %2135 = vrot.lane.b32.xlu0 %v2112, 96
        %v2136 = vpop.permute.xlu0 %2135
        %v2149 = vadd.f32 %v2096, %v2114
        %v2150 = vadd.f32 %v2097, %v2116
        %v2151 = vadd.f32 %v2098, %v2118
        %v2152 = vadd.f32 %v2099, %v2120
        %v2153 = vadd.f32 %v2100, %v2122
        %v2154 = vadd.f32 %v2101, %v2124
        %v2155 = vadd.f32 %v2102, %v2126
        %v2156 = vadd.f32 %v2103, %v2128
        %v2157 = vadd.f32 %v2104, %v2130
        %v2158 = vadd.f32 %v2105, %v2132
        %v2159 = vadd.f32 %v2106, %v2134
        %v2160 = vadd.f32 %v2107, %v2136
        %v2161 = vlaneseq
        %v2162 = vshrl.u32 %v2161, 7
        %v2163 = vsub.s32 0, %v2162
        %v2164 = vrot.slane %v296, %v2163
        %v2165 = vadd.f32 %v2149, %v2164
        %v2166 = vadd.f32 %v2150, %v2164
        %v2167 = vadd.f32 %v2151, %v2164
        %v2168 = vadd.f32 %v2152, %v2164
        %v2169 = vadd.f32 %v2153, %v2164
        %v2170 = vadd.f32 %v2154, %v2164
        %v2171 = vadd.f32 %v2155, %v2164
        %v2172 = vadd.f32 %v2156, %v2164
        %v2173 = vadd.f32 %v2157, %v2164
        %v2174 = vadd.f32 %v2158, %v2164
        %v2175 = vadd.f32 %v2159, %v2164
        %v2176 = vadd.f32 %v2160, %v2164
        %vm2177 = vcmp.ge.f32.partialorder %v2165, 0.0
        %vm2178 = vcmp.ge.f32.partialorder %v2166, 0.0
        %vm2179 = vcmp.ge.f32.partialorder %v2167, 0.0
        %vm2180 = vcmp.ge.f32.partialorder %v2168, 0.0
        %vm2181 = vcmp.ge.f32.partialorder %v2169, 0.0
        %vm2182 = vcmp.ge.f32.partialorder %v2170, 0.0
        %vm2183 = vcmp.ge.f32.partialorder %v2171, 0.0
        %vm2184 = vcmp.ge.f32.partialorder %v2172, 0.0
        %vm2185 = vcmp.ge.f32.partialorder %v2173, 0.0
        %vm2186 = vcmp.ge.f32.partialorder %v2174, 0.0
        %vm2187 = vcmp.ge.f32.partialorder %v2175, 0.0
        %vm2188 = vcmp.ge.f32.partialorder %v2176, 0.0
        %v2189 = vlaneseq
        %v2190 = vshrl.u32 %v2189, 7
        %v2191 = vsub.s32 0, %v2190
        %v2192 = vrot.slane %v297, %v2191
        %v2193 = vmul.f32 %v2165, %v2192
        %v2194 = vmul.f32 %v2166, %v2192
        %v2195 = vmul.f32 %v2167, %v2192
        %v2196 = vmul.f32 %v2168, %v2192
        %v2197 = vmul.f32 %v2169, %v2192
        %v2198 = vmul.f32 %v2170, %v2192
        %v2199 = vmul.f32 %v2171, %v2192
        %v2200 = vmul.f32 %v2172, %v2192
        %v2201 = vmul.f32 %v2173, %v2192
        %v2202 = vmul.f32 %v2174, %v2192
        %v2203 = vmul.f32 %v2175, %v2192
        %v2204 = vmul.f32 %v2176, %v2192
        %v2205 = vsel %vm2177, %v2165, %v2193
        %v2206 = vsel %vm2178, %v2166, %v2194
        %v2207 = vsel %vm2179, %v2167, %v2195
        %v2208 = vsel %vm2180, %v2168, %v2196
        %v2209 = vsel %vm2181, %v2169, %v2197
        %v2210 = vsel %vm2182, %v2170, %v2198
        %v2211 = vsel %vm2183, %v2171, %v2199
        %v2212 = vsel %vm2184, %v2172, %v2200
        %v2213 = vsel %vm2185, %v2173, %v2201
        %v2214 = vsel %vm2186, %v2174, %v2202
        %v2215 = vsel %vm2187, %v2175, %v2203
        %v2216 = vsel %vm2188, %v2176, %v2204
        %v2217 = vunpack.c.l.bf16 %v309
        %v2218 = vunpack.c.l.bf16 %v310
        %v2219 = vunpack.c.l.bf16 %v311
        %v2220 = vunpack.c.l.bf16 %v312
        %v2221 = vunpack.c.l.bf16 %v313
        %v2222 = vunpack.c.l.bf16 %v314
        %v2223 = vunpack.c.l.bf16 %v315
        %v2224 = vunpack.c.l.bf16 %v316
        %v2225 = vunpack.c.l.bf16 %v317
        %v2226 = vunpack.c.l.bf16 %v318
        %v2227 = vunpack.c.l.bf16 %v319
        %v2228 = vunpack.c.l.bf16 %v320
        %v2229 = vunpack.c.l.bf16 %v321
        %v2230 = vunpack.c.l.bf16 %v322
        %v2231 = vunpack.c.l.bf16 %v323
        %v2232 = vunpack.c.l.bf16 %v324
        %v2233 = vunpack.c.l.bf16 %v325
        %v2234 = vunpack.c.l.bf16 %v326
        %v2253 = vrot.slane %v2217, 1
        %v2254 = vrot.slane %v2218, 1
        %v2255 = vsel %vm1689, %v2253, %v2254
        %v2256 = vrot.slane %v2219, 1
        %v2257 = vsel %vm1689, %v2254, %v2256
        %v2258 = vrot.slane %v2220, 1
        %v2259 = vrot.slane %v2221, 1
        %v2260 = vsel %vm1689, %v2258, %v2259
        %v2261 = vrot.slane %v2222, 1
        %v2262 = vsel %vm1689, %v2259, %v2261
        %v2263 = vrot.slane %v2223, 1
        %v2264 = vrot.slane %v2224, 1
        %v2265 = vsel %vm1689, %v2263, %v2264
        %v2266 = vrot.slane %v2225, 1
        %v2267 = vsel %vm1689, %v2264, %v2266
        %v2268 = vrot.slane %v2226, 1
        %v2269 = vrot.slane %v2227, 1
        %v2270 = vsel %vm1689, %v2268, %v2269
        %v2271 = vrot.slane %v2228, 1
        %v2272 = vsel %vm1689, %v2269, %v2271
        %v2273 = vrot.slane %v2229, 1
        %v2274 = vrot.slane %v2230, 1
        %v2275 = vsel %vm1689, %v2273, %v2274
        %v2276 = vrot.slane %v2231, 1
        %v2277 = vsel %vm1689, %v2274, %v2276
        %v2278 = vrot.slane %v2232, 1
        %v2279 = vrot.slane %v2233, 1
        %v2280 = vsel %vm1689, %v2278, %v2279
        %v2281 = vrot.slane %v2234, 1
        %v2282 = vsel %vm1689, %v2279, %v2281
        %v2295 = vsub.f32 %v2205, %v2255
        %v2296 = vsub.f32 %v2206, %v2257
        %v2297 = vsub.f32 %v2207, %v2260
        %v2298 = vsub.f32 %v2208, %v2262
        %v2299 = vsub.f32 %v2209, %v2265
        %v2300 = vsub.f32 %v2210, %v2267
        %v2301 = vsub.f32 %v2211, %v2270
        %v2302 = vsub.f32 %v2212, %v2272
        %v2303 = vsub.f32 %v2213, %v2275
        %v2304 = vsub.f32 %v2214, %v2277
        %v2305 = vsub.f32 %v2215, %v2280
        %v2306 = vsub.f32 %v2216, %v2282
        %v2307 = vpack.c.bf16 %v2296, %v2295
        %v2308 = vpack.c.bf16 %v2298, %v2297
        %v2309 = vpack.c.bf16 %v2300, %v2299
        %v2310 = vpack.c.bf16 %v2302, %v2301
        %v2311 = vpack.c.bf16 %v2304, %v2303
        %v2312 = vpack.c.bf16 %v2306, %v2305
        %v2319 = vunpack.c.l.b16 %v2307
        %v2320 = vunpack.c.h.b16 %v2307
        %v2321 = vunpack.c.l.b16 %v2308
        %v2322 = vunpack.c.h.b16 %v2308
        %v2323 = vunpack.c.l.b16 %v2309
        %v2324 = vunpack.c.h.b16 %v2309
        %v2325 = vunpack.c.l.b16 %v2310
        %v2326 = vunpack.c.h.b16 %v2310
        %v2327 = vunpack.c.l.b16 %v2311
        %v2328 = vunpack.c.h.b16 %v2311
        %v2329 = vunpack.c.l.b16 %v2312
        %v2330 = vunpack.c.h.b16 %v2312
        %v2331 = vpack.c.b16 %v2319, %v2319
        %v2332 = vpack.c.b16 %v2320, %v2320
        %v2333 = vpack.c.b16 %v2321, %v2321
        %v2334 = vpack.c.b16 %v2322, %v2322
        %v2335 = vpack.c.b16 %v2323, %v2323
        %v2336 = vpack.c.b16 %v2324, %v2324
        %v2337 = vpack.c.b16 %v2325, %v2325
        %v2338 = vpack.c.b16 %v2326, %v2326
        %v2339 = vpack.c.b16 %v2327, %v2327
        %v2340 = vpack.c.b16 %v2328, %v2328
        %v2341 = vpack.c.b16 %v2329, %v2329
        %v2342 = vpack.c.b16 %v2330, %v2330
        %v2344 = vshrl.u32 %v2331, 16
        %v2346 = vrot.slane %v2344, 7
        %v2347 = vshll.u32 %v2331, 16
        %v2349 = vor.u32 %v2346, %v2347
        %v2350 = vrot.slane %v2346, 4
        %v2352 = vshrl.u32 %v2332, 16
        %v2354 = vrot.slane %v2352, 7
        %v2355 = vshll.u32 %v2332, 16
        %v2357 = vor.u32 %v2354, %v2355
        %v2358 = vsel %vm1098, %v2350, %v2357
        %v2359 = vrot.slane %v2354, 4
        %v2361 = vshrl.u32 %v2333, 16
        %v2363 = vrot.slane %v2361, 7
        %v2364 = vshll.u32 %v2333, 16
        %v2366 = vor.u32 %v2363, %v2364
        %v2367 = vrot.slane %v2363, 4
        %v2369 = vshrl.u32 %v2334, 16
        %v2371 = vrot.slane %v2369, 7
        %v2372 = vshll.u32 %v2334, 16
        %v2374 = vor.u32 %v2371, %v2372
        %v2375 = vsel %vm1098, %v2367, %v2374
        %v2376 = vrot.slane %v2371, 4
        %v2378 = vshrl.u32 %v2335, 16
        %v2380 = vrot.slane %v2378, 7
        %v2381 = vshll.u32 %v2335, 16
        %v2383 = vor.u32 %v2380, %v2381
        %v2384 = vrot.slane %v2380, 4
        %v2386 = vshrl.u32 %v2336, 16
        %v2388 = vrot.slane %v2386, 7
        %v2389 = vshll.u32 %v2336, 16
        %v2391 = vor.u32 %v2388, %v2389
        %v2392 = vsel %vm1098, %v2384, %v2391
        %v2393 = vrot.slane %v2388, 4
        %v2395 = vshrl.u32 %v2337, 16
        %v2397 = vrot.slane %v2395, 7
        %v2398 = vshll.u32 %v2337, 16
        %v2400 = vor.u32 %v2397, %v2398
        %v2401 = vrot.slane %v2397, 4
        %v2403 = vshrl.u32 %v2338, 16
        %v2405 = vrot.slane %v2403, 7
        %v2406 = vshll.u32 %v2338, 16
        %v2408 = vor.u32 %v2405, %v2406
        %v2409 = vsel %vm1098, %v2401, %v2408
        %v2410 = vrot.slane %v2405, 4
        %v2412 = vshrl.u32 %v2339, 16
        %v2414 = vrot.slane %v2412, 7
        %v2415 = vshll.u32 %v2339, 16
        %v2417 = vor.u32 %v2414, %v2415
        %v2418 = vrot.slane %v2414, 4
        %v2420 = vshrl.u32 %v2340, 16
        %v2422 = vrot.slane %v2420, 7
        %v2423 = vshll.u32 %v2340, 16
        %v2425 = vor.u32 %v2422, %v2423
        %v2426 = vsel %vm1098, %v2418, %v2425
        %v2427 = vrot.slane %v2422, 4
        %v2429 = vshrl.u32 %v2341, 16
        %v2431 = vrot.slane %v2429, 7
        %v2432 = vshll.u32 %v2341, 16
        %v2434 = vor.u32 %v2431, %v2432
        %v2435 = vrot.slane %v2431, 4
        %v2437 = vshrl.u32 %v2342, 16
        %v2439 = vrot.slane %v2437, 7
        %v2440 = vshll.u32 %v2342, 16
        %v2442 = vor.u32 %v2439, %v2440
        %v2443 = vsel %vm1098, %v2435, %v2442
        %v2444 = vrot.slane %v2439, 4
        %vm2463 = vcmask 27648
        %vm2464 = vmand %vm2463, %vm1260
        %v2465 = vld [vmem:[#allocation3] sm:$0xf]
        %v2466 = vsel %vm2464, %v2349, %v2465
        %2467 = vst [vmem:[#allocation3] sm:$0xf] %v2466
        %vm2468 = vcmask 27648
        %2469 = vst.msk [vmem:[#allocation3 + $0x4] sm:$0xf] %vm2468, %v2358
        %vm2470 = vcmask 24576
        %vm2471 = vmand %vm2470, %vm1096
        %v2472 = vld [vmem:[#allocation3 + $0x8] sm:$0x1]
        %v2473 = vsel %vm2471, %v2359, %v2472
        %2474 = vst [vmem:[#allocation3 + $0x8] sm:$0x1] %v2473
        %v2475 = vld [vmem:[#allocation3 + $0xc] sm:$0xf]
        %v2476 = vsel %vm2464, %v2366, %v2475
        %2477 = vst [vmem:[#allocation3 + $0xc] sm:$0xf] %v2476
        %2478 = vst.msk [vmem:[#allocation3 + $0x10] sm:$0xf] %vm2468, %v2375
        %v2479 = vld [vmem:[#allocation3 + $0x14] sm:$0x1]
        %v2480 = vsel %vm2471, %v2376, %v2479
        %2481 = vst [vmem:[#allocation3 + $0x14] sm:$0x1] %v2480
        %v2482 = vld [vmem:[#allocation3 + $0x18] sm:$0xf]
        %v2483 = vsel %vm2464, %v2383, %v2482
        %2484 = vst [vmem:[#allocation3 + $0x18] sm:$0xf] %v2483
        %2485 = vst.msk [vmem:[#allocation3 + $0x1c] sm:$0xf] %vm2468, %v2392
        %v2486 = vld [vmem:[#allocation3 + $0x20] sm:$0x1]
        %v2487 = vsel %vm2471, %v2393, %v2486
        %2488 = vst [vmem:[#allocation3 + $0x20] sm:$0x1] %v2487
        %v2489 = vld [vmem:[#allocation3 + $0x24] sm:$0xf]
        %v2490 = vsel %vm2464, %v2400, %v2489
        %2491 = vst [vmem:[#allocation3 + $0x24] sm:$0xf] %v2490
        %2492 = vst.msk [vmem:[#allocation3 + $0x28] sm:$0xf] %vm2468, %v2409
        %v2493 = vld [vmem:[#allocation3 + $0x2c] sm:$0x1]
        %v2494 = vsel %vm2471, %v2410, %v2493
        %2495 = vst [vmem:[#allocation3 + $0x2c] sm:$0x1] %v2494
        %v2496 = vld [vmem:[#allocation3 + $0x30] sm:$0xf]
        %v2497 = vsel %vm2464, %v2417, %v2496
        %2498 = vst [vmem:[#allocation3 + $0x30] sm:$0xf] %v2497
        %2499 = vst.msk [vmem:[#allocation3 + $0x34] sm:$0xf] %vm2468, %v2426
        %v2500 = vld [vmem:[#allocation3 + $0x38] sm:$0x1]
        %v2501 = vsel %vm2471, %v2427, %v2500
        %2502 = vst [vmem:[#allocation3 + $0x38] sm:$0x1] %v2501
        %v2503 = vld [vmem:[#allocation3 + $0x3c] sm:$0xf]
        %v2504 = vsel %vm2464, %v2434, %v2503
        %2505 = vst [vmem:[#allocation3 + $0x3c] sm:$0xf] %v2504
        %2506 = vst.msk [vmem:[#allocation3 + $0x40] sm:$0xf] %vm2468, %v2443
        %v2507 = vld [vmem:[#allocation3 + $0x44] sm:$0x1]
        %v2508 = vsel %vm2471, %v2444, %v2507
        %2509 = vst [vmem:[#allocation3 + $0x44] sm:$0x1] %v2508
        %v2510 = vld [vmem:[#allocation3] sm:$0x1]
        %v2511 = vsel %vm2471, 0, %v2510
        %2512 = vst [vmem:[#allocation3] sm:$0x1] %v2511
        %v2513 = vld [vmem:[#allocation3 + $0xc] sm:$0x1]
        %v2514 = vsel %vm2471, 0, %v2513
        %2515 = vst [vmem:[#allocation3 + $0xc] sm:$0x1] %v2514
        %v2516 = vld [vmem:[#allocation3 + $0x18] sm:$0x1]
        %v2517 = vsel %vm2471, 0, %v2516
        %2518 = vst [vmem:[#allocation3 + $0x18] sm:$0x1] %v2517
        %v2519 = vld [vmem:[#allocation3 + $0x24] sm:$0x1]
        %v2520 = vsel %vm2471, 0, %v2519
        %2521 = vst [vmem:[#allocation3 + $0x24] sm:$0x1] %v2520
        %v2522 = vld [vmem:[#allocation3 + $0x30] sm:$0x1]
        %v2523 = vsel %vm2471, 0, %v2522
        %2524 = vst [vmem:[#allocation3 + $0x30] sm:$0x1] %v2523
        %v2525 = vld [vmem:[#allocation3 + $0x3c] sm:$0x1]
        %v2526 = vsel %vm2471, 0, %v2525
        %2527 = vst [vmem:[#allocation3 + $0x3c] sm:$0x1] %v2526
        %v2528 = vld [vmem:[#allocation3 + $0x8] sm:$0xf]
        %v2529 = vsel %vm2464, 0, %v2528
        %2530 = vst [vmem:[#allocation3 + $0x8] sm:$0xf] %v2529
        %v2531 = vld [vmem:[#allocation3 + $0x14] sm:$0xf]
        %v2532 = vsel %vm2464, 0, %v2531
        %2533 = vst [vmem:[#allocation3 + $0x14] sm:$0xf] %v2532
        %v2534 = vld [vmem:[#allocation3 + $0x20] sm:$0xf]
        %v2535 = vsel %vm2464, 0, %v2534
        %2536 = vst [vmem:[#allocation3 + $0x20] sm:$0xf] %v2535
        %v2537 = vld [vmem:[#allocation3 + $0x2c] sm:$0xf]
        %v2538 = vsel %vm2464, 0, %v2537
        %2539 = vst [vmem:[#allocation3 + $0x2c] sm:$0xf] %v2538
        %v2540 = vld [vmem:[#allocation3 + $0x38] sm:$0xf]
        %v2541 = vsel %vm2464, 0, %v2540
        %2542 = vst [vmem:[#allocation3 + $0x38] sm:$0xf] %v2541
        %v2543 = vld [vmem:[#allocation3 + $0x44] sm:$0xf]
        %v2544 = vsel %vm2464, 0, %v2543
        %2545 = vst [vmem:[#allocation3 + $0x44] sm:$0xf] %v2544
        // Predicated region
        $region57: #{tpu_custom_call.1} parent=47 // pred_check
          %p2546 = pneg %p1369
        $region58: #{tpu_custom_call.1} parent=47 // pred_check_branch
          %2548 = sbr.rel (%p2546) target = $region60
        $region59: #{tpu_custom_call.1} parent=47 // pred_region
          %2549 = vst.msk [vmem:[#allocation3] sm:$0xf] %vm2468, 0
          %2550 = vst.msk [vmem:[#allocation3 + $0x4] sm:$0xf] %vm2468, 0
          %2551 = vst.msk [vmem:[#allocation3 + $0x8] sm:$0xf] %vm2468, 0
        $region60: #{tpu_custom_call.1} parent=47 // pred_fallthru
          _
        // Predicated region
        $region61: #{tpu_custom_call.1} parent=47 // pred_check
          %p2552 = pneg %p1379
        $region62: #{tpu_custom_call.1} parent=47 // pred_check_branch
          %2554 = sbr.rel (%p2552) target = $region64
        $region63: #{tpu_custom_call.1} parent=47 // pred_region
          %s2555 = scalar_lea.vmem [#allocation3], 60
          %2556 = vst.msk [vmem:[%s2555] sm:$0xf] %vm2468, 0
          %2557 = vst.msk [vmem:[%s2555 + $0x4] sm:$0xf] %vm2468, 0
          %2558 = vst.msk [vmem:[%s2555 + $0x8] sm:$0xf] %vm2468, 0
        $region64: #{tpu_custom_call.1} parent=47 // pred_fallthru
          _
        %v2559 = vld [vmem:[#allocation3] sm:$0xf]
        %v2560 = vld [vmem:[#allocation3 + $0x4] sm:$0xf]
        %v2561 = vld [vmem:[#allocation3 + $0x8] sm:$0xf]
        %v2562 = vld [vmem:[#allocation3 + $0xc] sm:$0xf]
        %v2563 = vld [vmem:[#allocation3 + $0x10] sm:$0xf]
        %v2564 = vld [vmem:[#allocation3 + $0x14] sm:$0xf]
        %v2565 = vld [vmem:[#allocation3 + $0x18] sm:$0xf]
        %v2566 = vld [vmem:[#allocation3 + $0x1c] sm:$0xf]
        %v2567 = vld [vmem:[#allocation3 + $0x20] sm:$0xf]
        %v2568 = vld [vmem:[#allocation3 + $0x24] sm:$0xf]
        %v2569 = vld [vmem:[#allocation3 + $0x28] sm:$0xf]
        %v2570 = vld [vmem:[#allocation3 + $0x2c] sm:$0xf]
        %v2571 = vld [vmem:[#allocation3 + $0x30] sm:$0xf]
        %v2572 = vld [vmem:[#allocation3 + $0x34] sm:$0xf]
        %v2573 = vld [vmem:[#allocation3 + $0x38] sm:$0xf]
        %v2574 = vld [vmem:[#allocation3 + $0x3c] sm:$0xf]
        %v2575 = vld [vmem:[#allocation3 + $0x40] sm:$0xf]
        %v2576 = vld [vmem:[#allocation3 + $0x44] sm:$0xf]
        %v2585 = vunpack.c.l.b16 %v2559
        %v2586 = vunpack.c.l.b16 %v2560
        %v2587 = vunpack.c.l.b16 %v2562
        %v2588 = vunpack.c.l.b16 %v2563
        %v2589 = vunpack.c.l.b16 %v2565
        %v2590 = vunpack.c.l.b16 %v2566
        %v2591 = vunpack.c.l.b16 %v2568
        %v2592 = vunpack.c.l.b16 %v2569
        %v2593 = vpack.c.b16 %v2586, %v2585
        %v2594 = vpack.c.b16 %v2588, %v2587
        %v2595 = vpack.c.b16 %v2590, %v2589
        %v2596 = vpack.c.b16 %v2592, %v2591
        %v2601 = vunpack.c.l.b16 %v2561
        %v2602 = vunpack.c.l.b16 %v2564
        %v2603 = vunpack.c.l.b16 %v2567
        %v2604 = vunpack.c.l.b16 %v2570
        %v2605 = vpack.c.b16 %v2601, %v2601
        %v2606 = vpack.c.b16 %v2602, %v2602
        %v2607 = vpack.c.b16 %v2603, %v2603
        %v2608 = vpack.c.b16 %v2604, %v2604
        %v2610 = vshrl.u32 %v2593, 16
        %v2612 = vshll.u32 %v2593, 16
        %v2614 = vrot.slane %v2612, 1
        %v2615 = vor.u32 %v2610, %v2614
        %v2617 = vshll.u32 %v2605, 16
        %v2619 = vrot.slane %v2617, 1
        %v2620 = vsel %vm397, %v2615, %v2619
        %v2622 = vshrl.u32 %v2594, 16
        %v2624 = vshll.u32 %v2594, 16
        %v2626 = vrot.slane %v2624, 1
        %v2627 = vor.u32 %v2622, %v2626
        %v2629 = vshll.u32 %v2606, 16
        %v2631 = vrot.slane %v2629, 1
        %v2632 = vsel %vm397, %v2627, %v2631
        %v2634 = vshrl.u32 %v2595, 16
        %v2636 = vshll.u32 %v2595, 16
        %v2638 = vrot.slane %v2636, 1
        %v2639 = vor.u32 %v2634, %v2638
        %v2641 = vshll.u32 %v2607, 16
        %v2643 = vrot.slane %v2641, 1
        %v2644 = vsel %vm397, %v2639, %v2643
        %v2646 = vshrl.u32 %v2596, 16
        %v2648 = vshll.u32 %v2596, 16
        %v2650 = vrot.slane %v2648, 1
        %v2651 = vor.u32 %v2646, %v2650
        %v2653 = vshll.u32 %v2608, 16
        %v2655 = vrot.slane %v2653, 1
        %v2656 = vsel %vm397, %v2651, %v2655
        %2657 = vrot.lane.b32.xlu0 %v2620, 4
        %v2658 = vpop.permute.xlu0 %2657
        %2659 = vrot.lane.b32.xlu0 %v2632, 4
        %v2660 = vpop.permute.xlu0 %2659
        %2661 = vrot.lane.b32.xlu0 %v2644, 4
        %v2662 = vpop.permute.xlu0 %2661
        %2663 = vrot.lane.b32.xlu0 %v2656, 4
        %v2664 = vpop.permute.xlu0 %2663
        %v2665 = vrot.slane %v2593, 1
        %v2666 = vrot.slane %v2605, 1
        %v2667 = vsel %vm510, %v2665, %v2666
        %v2668 = vrot.slane %v2594, 1
        %v2669 = vrot.slane %v2606, 1
        %v2670 = vsel %vm510, %v2668, %v2669
        %v2671 = vrot.slane %v2595, 1
        %v2672 = vrot.slane %v2607, 1
        %v2673 = vsel %vm510, %v2671, %v2672
        %v2674 = vrot.slane %v2596, 1
        %v2675 = vrot.slane %v2608, 1
        %v2676 = vsel %vm510, %v2674, %v2675
        %2677 = vrot.lane.b32.xlu0 %v2667, 8
        %v2678 = vpop.permute.xlu0 %2677
        %2679 = vrot.lane.b32.xlu0 %v2670, 8
        %v2680 = vpop.permute.xlu0 %2679
        %2681 = vrot.lane.b32.xlu0 %v2673, 8
        %v2682 = vpop.permute.xlu0 %2681
        %2683 = vrot.lane.b32.xlu0 %v2676, 8
        %v2684 = vpop.permute.xlu0 %2683
        %v2687 = vunpack.c.l.b16 %v2571
        %v2688 = vunpack.c.l.b16 %v2572
        %v2689 = vpack.c.b16 %v2688, %v2687
        %2690 = vrot.lane.b32.xlu0 %v2594, 12
        %v2691 = vpop.permute.xlu0 %2690
        %2692 = vrot.lane.b32.xlu0 %v2595, 12
        %v2693 = vpop.permute.xlu0 %2692
        %2694 = vrot.lane.b32.xlu0 %v2596, 12
        %v2695 = vpop.permute.xlu0 %2694
        %2696 = vrot.lane.b32.xlu0 %v2689, 12
        %v2697 = vpop.permute.xlu0 %2696
        %v2699 = vunpack.c.l.b16 %v2573
        %v2700 = vpack.c.b16 %v2699, %v2699
        %v2702 = vshrl.u32 %v2689, 16
        %v2704 = vshll.u32 %v2689, 16
        %v2706 = vrot.slane %v2704, 1
        %v2707 = vor.u32 %v2702, %v2706
        %v2709 = vshll.u32 %v2700, 16
        %v2711 = vrot.slane %v2709, 1
        %v2712 = vsel %vm397, %v2707, %v2711
        %2713 = vrot.lane.b32.xlu0 %v2632, 16
        %v2714 = vpop.permute.xlu0 %2713
        %2715 = vrot.lane.b32.xlu0 %v2644, 16
        %v2716 = vpop.permute.xlu0 %2715
        %2717 = vrot.lane.b32.xlu0 %v2656, 16
        %v2718 = vpop.permute.xlu0 %2717
        %2719 = vrot.lane.b32.xlu0 %v2712, 16
        %v2720 = vpop.permute.xlu0 %2719
        %v2721 = vrot.slane %v2689, 1
        %v2722 = vrot.slane %v2700, 1
        %v2723 = vsel %vm510, %v2721, %v2722
        %2724 = vrot.lane.b32.xlu0 %v2670, 20
        %v2725 = vpop.permute.xlu0 %2724
        %2726 = vrot.lane.b32.xlu0 %v2673, 20
        %v2727 = vpop.permute.xlu0 %2726
        %2728 = vrot.lane.b32.xlu0 %v2676, 20
        %v2729 = vpop.permute.xlu0 %2728
        %2730 = vrot.lane.b32.xlu0 %v2723, 20
        %v2731 = vpop.permute.xlu0 %2730
        %v2734 = vunpack.c.l.b16 %v2574
        %v2735 = vunpack.c.l.b16 %v2575
        %v2736 = vpack.c.b16 %v2735, %v2734
        %2737 = vrot.lane.b32.xlu0 %v2595, 24
        %v2738 = vpop.permute.xlu0 %2737
        %2739 = vrot.lane.b32.xlu0 %v2596, 24
        %v2740 = vpop.permute.xlu0 %2739
        %2741 = vrot.lane.b32.xlu0 %v2689, 24
        %v2742 = vpop.permute.xlu0 %2741
        %2743 = vrot.lane.b32.xlu0 %v2736, 24
        %v2744 = vpop.permute.xlu0 %2743
        %v2746 = vunpack.c.l.b16 %v2576
        %v2747 = vpack.c.b16 %v2746, %v2746
        %v2749 = vshrl.u32 %v2736, 16
        %v2751 = vshll.u32 %v2736, 16
        %v2753 = vrot.slane %v2751, 1
        %v2754 = vor.u32 %v2749, %v2753
        %v2756 = vshll.u32 %v2747, 16
        %v2758 = vrot.slane %v2756, 1
        %v2759 = vsel %vm397, %v2754, %v2758
        %2760 = vrot.lane.b32.xlu0 %v2644, 28
        %v2761 = vpop.permute.xlu0 %2760
        %2762 = vrot.lane.b32.xlu0 %v2656, 28
        %v2763 = vpop.permute.xlu0 %2762
        %2764 = vrot.lane.b32.xlu0 %v2712, 28
        %v2765 = vpop.permute.xlu0 %2764
        %2766 = vrot.lane.b32.xlu0 %v2759, 28
        %v2767 = vpop.permute.xlu0 %2766
        %v2768 = vrot.slane %v2736, 1
        %v2769 = vrot.slane %v2747, 1
        %v2770 = vsel %vm510, %v2768, %v2769
        %2771 = vrot.lane.b32.xlu0 %v2673, 32
        %v2772 = vpop.permute.xlu0 %2771
        %2773 = vrot.lane.b32.xlu0 %v2676, 32
        %v2774 = vpop.permute.xlu0 %2773
        %2775 = vrot.lane.b32.xlu0 %v2723, 32
        %v2776 = vpop.permute.xlu0 %2775
        %2777 = vrot.lane.b32.xlu0 %v2770, 32
        %v2778 = vpop.permute.xlu0 %2777
        %v2780 = vsel %vm693, %v2593, %v2658
        %v2782 = vsel %vm693, %v2594, %v2660
        %v2784 = vsel %vm693, %v2595, %v2662
        %v2786 = vsel %vm693, %v2596, %v2664
        %v2788 = vsel %vm710, %v2780, %v2678
        %v2790 = vsel %vm710, %v2782, %v2680
        %v2792 = vsel %vm710, %v2784, %v2682
        %v2794 = vsel %vm710, %v2786, %v2684
        %v2796 = vsel %vm727, %v2788, %v2691
        %v2798 = vsel %vm727, %v2790, %v2693
        %v2800 = vsel %vm727, %v2792, %v2695
        %v2802 = vsel %vm727, %v2794, %v2697
        %v2804 = vsel %vm744, %v2796, %v2714
        %v2806 = vsel %vm744, %v2798, %v2716
        %v2808 = vsel %vm744, %v2800, %v2718
        %v2810 = vsel %vm744, %v2802, %v2720
        %v2812 = vsel %vm761, %v2804, %v2725
        %v2814 = vsel %vm761, %v2806, %v2727
        %v2816 = vsel %vm761, %v2808, %v2729
        %v2818 = vsel %vm761, %v2810, %v2731
        %v2820 = vsel %vm778, %v2812, %v2738
        %v2822 = vsel %vm778, %v2814, %v2740
        %v2824 = vsel %vm778, %v2816, %v2742
        %v2826 = vsel %vm778, %v2818, %v2744
        %v2828 = vsel %vm795, %v2820, %v2761
        %v2830 = vsel %vm795, %v2822, %v2763
        %v2832 = vsel %vm795, %v2824, %v2765
        %v2834 = vsel %vm795, %v2826, %v2767
        %v2836 = vsel %vm812, %v2828, %v2772
        %v2838 = vsel %vm812, %v2830, %v2774
        %v2840 = vsel %vm812, %v2832, %v2776
        %v2842 = vsel %vm812, %v2834, %v2778
        %v2843 = vld [vmem:[%s3] sm:$0xf]
        %v2844 = vld [vmem:[%s3 + $0x4] sm:$0xf]
        %v2845 = vld [vmem:[%s3 + $0x8] sm:$0xf]
        %v2846 = vld [vmem:[%s3 + $0xc] sm:$0xf]
        %v2847 = vld [vmem:[%s3 + $0x10] sm:$0x3]
        %v2853 = vunpack.c.l.b16 %v2843
        %v2854 = vunpack.c.l.b16 %v2844
        %v2855 = vunpack.c.l.b16 %v2845
        %v2856 = vunpack.c.l.b16 %v2846
        %v2857 = vunpack.c.l.b16 %v2847
        %v2858 = vpack.c.b16 %v2854, %v2853
        %v2859 = vpack.c.b16 %v2856, %v2855
        %v2860 = vpack.c.b16 %v2857, %v2857
        %v2863 = vsel %vm849, %v2836, 0
        %v2865 = vsel %vm849, %v2838, 0
        %v2867 = vsel %vm849, %v2840, 0
        %v2869 = vsel %vm849, %v2842, 0
        %v2872 = vsel %vm866, %v2860, 0
        %2874 = vmatprep.subr.bf16.mxu0 0
        %2875 = vmatpush1.bf16.msra.mxu0 %v2858
        %2876 = vmatprep.subr.bf16.mxu0 0
        %2877 = vmatpush1.bf16.msra.mxu0 %v2859
        %2878 = vmatprep.subr.bf16.mxu0 0
        %2879 = vmatpush1.bf16.msra.mxu0 %v2872
        %2880 = vmatprep.subr.bf16.mxu0 0
        %2881 = vmatpush1.bf16.msra.mxu0 0
        %2882 = vmatprep.subr.bf16.mxu0 0
        %2883 = vmatpush1.bf16.msra.mxu0 0
        %2884 = vmatprep.subr.bf16.mxu0 0
        %2885 = vmatpush1.bf16.msra.mxu0 0
        %2886 = vmatprep.subr.bf16.mxu0 0
        %2887 = vmatpush1.bf16.msra.mxu0 0
        %2888 = vmatprep.subr.bf16.mxu0 0
        %2889 = vmatpush1.bf16.msra.mxu0 0
        %2890 = vmatprep.subr.bf16.mxu0 0
        %2891 = vmatpush1.bf16.msra.mxu0 0
        %2892 = vmatprep.subr.bf16.mxu0 0
        %2893 = vmatpush1.bf16.msra.mxu0 0
        %2894 = vmatprep.subr.bf16.mxu0 0
        %2895 = vmatpush1.bf16.msra.mxu0 0
        %2896 = vmatprep.subr.bf16.mxu0 0
        %2897 = vmatpush1.bf16.msra.mxu0 0
        %2898 = vmatprep.subr.bf16.mxu0 0
        %2899 = vmatpush1.bf16.msra.mxu0 0
        %2900 = vmatprep.subr.bf16.mxu0 0
        %2901 = vmatpush1.bf16.msra.mxu0 0
        %2902 = vmatprep.subr.bf16.mxu0 0
        %2903 = vmatpush1.bf16.msra.mxu0 0
        %2904 = vmatprep.subr.bf16.mxu0 0
        %2905 = vmatpush1.bf16.msra.mxu0 0
        %2906 = vmatprep.mubr.bf16.mxu0 0
        %2907 = vmatmul.mubr.bf16.gmra.mrb[0].mxu0 %v2863
        %v2908 = vpop.f32.mrb[0].mxu0
        %v2909 = vadd.f32 0.0, %v2908
        %v2910 = vpop.f32.mrb[0].mxu0
        %v2911 = vpop.f32.mrb[0].mxu0
        %v2912 = vadd.f32 0.0, %v2911
        %v2913 = vpop.f32.mrb[0].mxu0
        %2914 = vmatprep.mubr.bf16.mxu0 0
        %2915 = vmatmul.mubr.bf16.gmra.mrb[0].mxu0 %v2865
        %v2916 = vpop.f32.mrb[0].mxu0
        %v2917 = vadd.f32 0.0, %v2916
        %v2918 = vpop.f32.mrb[0].mxu0
        %v2919 = vpop.f32.mrb[0].mxu0
        %v2920 = vadd.f32 0.0, %v2919
        %v2921 = vpop.f32.mrb[0].mxu0
        %2922 = vmatprep.mubr.bf16.mxu0 0
        %2923 = vmatmul.mubr.bf16.gmra.mrb[0].mxu0 %v2867
        %v2924 = vpop.f32.mrb[0].mxu0
        %v2925 = vadd.f32 0.0, %v2924
        %v2926 = vpop.f32.mrb[0].mxu0
        %v2927 = vpop.f32.mrb[0].mxu0
        %v2928 = vadd.f32 0.0, %v2927
        %v2929 = vpop.f32.mrb[0].mxu0
        %2930 = vmatprep.mubr.bf16.mxu0 0
        %2931 = vmatmul.mubr.bf16.gmra.mrb[0].mxu0 %v2869
        %v2932 = vpop.f32.mrb[0].mxu0
        %v2933 = vadd.f32 0.0, %v2932
        %v2934 = vpop.f32.mrb[0].mxu0
        %v2935 = vpop.f32.mrb[0].mxu0
        %v2936 = vadd.f32 0.0, %v2935
        %v2937 = vpop.f32.mrb[0].mxu0
        %2938 = vdwg.mxu0
        %v2939 = vlaneseq
        %v2940 = vshrl.u32 %v2939, 7
        %v2941 = vsub.s32 0, %v2940
        %v2942 = vrot.slane %v298, %v2941
        %v2943 = vadd.f32 %v2909, %v2942
        %v2944 = vadd.f32 %v2912, %v2942
        %v2945 = vadd.f32 %v2917, %v2942
        %v2946 = vadd.f32 %v2920, %v2942
        %v2947 = vadd.f32 %v2925, %v2942
        %v2948 = vadd.f32 %v2928, %v2942
        %v2949 = vadd.f32 %v2933, %v2942
        %v2950 = vadd.f32 %v2936, %v2942
        %vm2951 = vcmp.ge.f32.partialorder %v2943, 0.0
        %vm2952 = vcmp.ge.f32.partialorder %v2944, 0.0
        %vm2953 = vcmp.ge.f32.partialorder %v2945, 0.0
        %vm2954 = vcmp.ge.f32.partialorder %v2946, 0.0
        %vm2955 = vcmp.ge.f32.partialorder %v2947, 0.0
        %vm2956 = vcmp.ge.f32.partialorder %v2948, 0.0
        %vm2957 = vcmp.ge.f32.partialorder %v2949, 0.0
        %vm2958 = vcmp.ge.f32.partialorder %v2950, 0.0
        %v2959 = vlaneseq
        %v2960 = vshrl.u32 %v2959, 7
        %v2961 = vsub.s32 0, %v2960
        %v2962 = vrot.slane %v299, %v2961
        %v2963 = vmul.f32 %v2943, %v2962
        %v2964 = vmul.f32 %v2944, %v2962
        %v2965 = vmul.f32 %v2945, %v2962
        %v2966 = vmul.f32 %v2946, %v2962
        %v2967 = vmul.f32 %v2947, %v2962
        %v2968 = vmul.f32 %v2948, %v2962
        %v2969 = vmul.f32 %v2949, %v2962
        %v2970 = vmul.f32 %v2950, %v2962
        %v2971 = vsel %vm2951, %v2943, %v2963
        %v2972 = vsel %vm2952, %v2944, %v2964
        %v2973 = vsel %vm2953, %v2945, %v2965
        %v2974 = vsel %vm2954, %v2946, %v2966
        %v2975 = vsel %vm2955, %v2947, %v2967
        %v2976 = vsel %vm2956, %v2948, %v2968
        %v2977 = vsel %vm2957, %v2949, %v2969
        %v2978 = vsel %vm2958, %v2950, %v2970
        %v2979 = vld [vmem:[%s285] sm:$0xff]
        %v2980 = vld [vmem:[%s285 + $0x8] sm:$0xff]
        %v2981 = vld [vmem:[%s285 + $0x10] sm:$0xff]
        %v2982 = vld [vmem:[%s285 + $0x18] sm:$0xff]
        %v2983 = vld [vmem:[%s285 + $0x20] sm:$0xff]
        %v2984 = vld [vmem:[%s285 + $0x28] sm:$0xff]
        %v2985 = vld [vmem:[%s285 + $0x30] sm:$0xff]
        %v2986 = vld [vmem:[%s285 + $0x38] sm:$0xff]
        %v2987 = vadd.f32 %v2971, %v2979
        %v2988 = vadd.f32 %v2972, %v2980
        %v2989 = vadd.f32 %v2973, %v2981
        %v2990 = vadd.f32 %v2974, %v2982
        %v2991 = vadd.f32 %v2975, %v2983
        %v2992 = vadd.f32 %v2976, %v2984
        %v2993 = vadd.f32 %v2977, %v2985
        %v2994 = vadd.f32 %v2978, %v2986
        %2995 = vst.msk [vmem:[%s285] sm:$0xff] %vm1039, %v2987
        %2996 = vst.msk [vmem:[%s285 + $0x8] sm:$0xff] %vm1039, %v2988
        %2997 = vst.msk [vmem:[%s285 + $0x10] sm:$0xff] %vm1039, %v2989
        %2998 = vst.msk [vmem:[%s285 + $0x18] sm:$0xff] %vm1039, %v2990
        %2999 = vst.msk [vmem:[%s285 + $0x20] sm:$0xff] %vm1039, %v2991
        %3000 = vst.msk [vmem:[%s285 + $0x28] sm:$0xff] %vm1039, %v2992
        %3001 = vst.msk [vmem:[%s285 + $0x30] sm:$0xff] %vm1039, %v2993
        %3002 = vst.msk [vmem:[%s285 + $0x38] sm:$0xff] %vm1039, %v2994
        %s3003 = sand.u32 %s195, 1
        %s3004 = scalar_lea.sflag [#allocation5], %s3003
        %s3005 = sand.u32 %s195, 1
        %s3006 = smul.addr %s3005, 64
        %s3007 = scalar_lea.vmem [#allocation4], %s3006
        // Predicated region
        $region65: #{tpu_custom_call.1} parent=47 // pred_check
          %p3008 = pneg %p205
        $region66: #{tpu_custom_call.1} parent=47 // pred_check_branch
          %3010 = sbr.rel (%p3008) target = $region68
        $region67: #{tpu_custom_call.1} parent=47 // pred_region
          %s3011 = smul.u32 4, %s26
          %s3013 = ssub.s32 1024, 1024
          %3014 = vsyncadd %s3004, %s3013
          %s3015 = smul.addr %s3011, 2
          %s3016 = smul.addr %s25, 32
          %s3017 = sadd.s32 %s3015, %s3016
          %s3018 = smul.addr %s3017, 128
          %s3019 = scalar_lea.hbm %s7, %s3018
          %s3020 = sshll.u32 %s3007, 4
          %s3021 = int_to_ptr.vmem [resolvable:$true] %s3020
          %3026 = dma.vmem_to_hbm [thread:$0]  %s3021, 1024, %s3019, %s3004, 128, 128, 8
        $region68: #{tpu_custom_call.1} parent=47 // pred_fallthru
          _
      $region48: #{tpu_custom_call.1} parent=5 // pred_fallthru
        _
      %p3027 = scmp.le.s32.totalorder 2, %s16
      // Predicated region
      $region69: #{tpu_custom_call.1} parent=5 // pred_check
        %p3028 = pneg %p3027
      $region70: #{tpu_custom_call.1} parent=5 // pred_check_branch
        %3030 = sbr.rel (%p3028) target = $region72
      $region71: #{tpu_custom_call.1} parent=5 // pred_region
        %s3031 = ssub.s32 %s16, 2
        // Predicated region
        $region73: #{tpu_custom_call.1} parent=71 // pred_check
          %p3032 = pneg %p211
        $region74: #{tpu_custom_call.1} parent=71 // pred_check_branch
          %3034 = sbr.rel (%p3032) target = $region76
        $region75: #{tpu_custom_call.1} parent=71 // pred_region
          %s3035 = sand.u32 %s196, 1
          %s3036 = scalar_lea.sflag [#allocation5], %s3035
          %s3037 = sand.u32 %s196, 1
          %s3038 = smul.addr %s3037, 64
          %s3039 = scalar_lea.vmem [#allocation4], %s3038
          %3040 = dma.done %s3036, 1024
        $region76: #{tpu_custom_call.1} parent=71 // pred_fallthru
          _
      $region72: #{tpu_custom_call.1} parent=5 // pred_fallthru
        _
    $region6: #{tpu_custom_call.1} parent=1 // loop_footer
      %s20 = sadd.s32 1, %s16
    $region7: #{tpu_custom_call.1} parent=1 // loop_footer_branch
      %15 = sbr.rel target = $region3
    $region8: #{tpu_custom_call.1} parent=1 // loop_exit
      _
    %3041 = vsyncpa [#allocation5], 1
    %s3042 = scalar_lea.sflag [#allocation5], 1
    %3043 = vsyncpa %s3042, 1

</llo_original>
